<compile_context>
chip_gen: v7x
topology: tpu7x:2x2x1
jax: 0.10.0
libtpu: 0.0.40
codegen_flags: <defaults>
</compile_context>

<pallas_src>
import jax
import jax.numpy as jnp
from jax.experimental import pallas as pl
from jax.experimental.pallas import tpu as pltpu


# ---------------------------------------------------------------------------
# Dense projection kernel: (M, K) @ (K, N) + (1, N) -> (M, N), tiled over rows.
# Used for both the hoisted input projection (N = 3H) and the decoder (N = V).
# ---------------------------------------------------------------------------
def _dense_bias_kernel(x_ref, w_ref, b_ref, o_ref):
    o_ref[...] = (
        jnp.dot(x_ref[...], w_ref[...], preferred_element_type=jnp.float32) + b_ref[...]
    ).astype(o_ref.dtype)


def dense_bias(x, w, b):
    M, K = x.shape
    N = w.shape[1]
    # Row tile: full M for small problems; otherwise a multiple of 8 that divides M.
    if M % 8 == 0 and M > 256:
        tm = 256
        while M % tm:
            tm -= 8
    else:
        tm = M
    grid = (M // tm,)
    # TODO(synk): at real model sizes, also tile N (vocab) and use bf16 weights /
    # pipeline_mode=pl.Buffered(1) on the weight spec to fit v7x's 64 MiB VMEM.
    return pl.pallas_call(
        _dense_bias_kernel,
        out_shape=jax.ShapeDtypeStruct((M, N), jnp.float32),
        grid_spec=pltpu.PrefetchScalarGridSpec(
            num_scalar_prefetch=0,
            grid=grid,
            in_specs=[
                pl.BlockSpec((tm, K), lambda i: (i, 0)),
                pl.BlockSpec((K, N), lambda i: (0, 0)),
                pl.BlockSpec((1, N), lambda i: (0, 0)),
            ],
            out_specs=pl.BlockSpec((tm, N), lambda i: (i, 0)),
        ),
        compiler_params=pltpu.CompilerParams(dimension_semantics=("parallel",)),
    )(x, w, b)


# ---------------------------------------------------------------------------
# GRU recurrence kernel: only the serial h @ W_hh path lives in the time loop.
#   gi:      (B, T, 3H)  precomputed x@W_ih + b_ih (+ b_hh for r/z gates), gate order [r|z|n]
#   whh_cat: (H, 3H)     fused hidden->hidden weights, gate order [r|z|n]
#   bhn:     (1, H)      hidden bias of the n-gate (must be applied before the r * (...) term)
# Outputs: hidden sequence (B, T, H) and final hidden state (B, H).
# ---------------------------------------------------------------------------
def gru_recurrence(gi, whh_cat, bhn):
    B, T, G = gi.shape
    H = whh_cat.shape[0]

    # Chunk of timesteps per grid iteration (amortizes ~0.35us/step grid overhead and makes
    # the hidden-sequence writeback sublane-dense). Largest divisor of T that is <= 16.
    chunk = 1
    for c in range(min(T, 16), 0, -1):
        if T % c == 0:
            chunk = c
            break
    grid = (T // chunk,)

    def kernel(gi_ref, whh_ref, bhn_ref, hseq_ref, hfinal_ref, h_scr):
        c = pl.program_id(0)

        @pl.when(c == 0)
        def _():
            # PyTorch uses a zero hidden state when hidden_state=None.
            h_scr[...] = jnp.zeros_like(h_scr)

        h = h_scr[...]                       # (B, H)
        whh = whh_ref[...]                   # (H, 3H), loop-invariant
        bhn_v = bhn_ref[...]                 # (1, H)

        # Static unroll over the chunk (chunk is a small Python int).
        for s in range(chunk):
            g = gi_ref[:, s, :]              # (B, 3H)  precomputed input-side gates
            gh = jnp.dot(h, whh, preferred_element_type=jnp.float32)  # (B, 3H)
            r = jax.nn.sigmoid(g[:, 0:H] + gh[:, 0:H])
            z = jax.nn.sigmoid(g[:, H:2 * H] + gh[:, H:2 * H])
            n = jnp.tanh(g[:, 2 * H:3 * H] + r * (gh[:, 2 * H:3 * H] + bhn_v))
            h = n + z * (h - n)              # == (1-z)*n + z*h, one fewer full-vreg op
            hseq_ref[:, s, :] = h

        h_scr[...] = h

        @pl.when(c == pl.num_programs(0) - 1)
        def _():
            hfinal_ref[...] = h              # written exactly once

    hseq, hfinal = pl.pallas_call(
        kernel,
        out_shape=(
            jax.ShapeDtypeStruct((B, T, H), jnp.float32),
            jax.ShapeDtypeStruct((B, H), jnp.float32),
        ),
        grid_spec=pltpu.PrefetchScalarGridSpec(
            num_scalar_prefetch=0,
            grid=grid,
            in_specs=[
                pl.BlockSpec((B, chunk, 3 * H), lambda c: (0, c, 0)),  # gi chunk
                pl.BlockSpec((H, 3 * H), lambda c: (0, 0)),            # W_hh (fused gates)
                pl.BlockSpec((1, H), lambda c: (0, 0)),                # b_hh_n
            ],
            out_specs=[
                pl.BlockSpec((B, chunk, H), lambda c: (0, c, 0)),      # hidden sequence chunk
                pl.BlockSpec((B, H), lambda c: (0, 0)),                # final hidden state
            ],
            scratch_shapes=[pltpu.VMEM((B, H), jnp.float32)],
        ),
        compiler_params=pltpu.CompilerParams(
            dimension_semantics=("arbitrary",),  # time is a carried recurrence
        ),
    )(gi, whh_cat, bhn)
    return hseq, hfinal


# ---------------------------------------------------------------------------
# Full forward pass.
# ---------------------------------------------------------------------------
@jax.jit
def language_model_forward(token_ids, params):
    """Forward pass. Returns (logits (B, T, V), hidden (1, B, H))."""
    emb_table = params["embedding"]          # (V, E)
    wih, whh = params["wih"], params["whh"]  # (3, E, H), (3, H, H)
    bih, bhh = params["bih"], params["bhh"]  # (3, H), (3, H)
    wdec, bdec = params["wdec"], params["bdec"]  # (H, V), (1, V)

    B, T = token_ids.shape
    V, E = emb_table.shape
    H = whh.shape[-1]

    # Fused / pre-folded parameter layouts, gate order [r|z|n] blocked along the lane axis.
    wih_cat = jnp.transpose(wih, (1, 0, 2)).reshape(E, 3 * H)
    whh_cat = jnp.transpose(whh, (1, 0, 2)).reshape(H, 3 * H)
    # Fold b_ih (all gates) and b_hh (r, z gates only) into the precomputed input projection;
    # b_hh_n must stay inside the r * (W_hn h + b_hn) term.
    bi_fold = jnp.concatenate([bih[0] + bhh[0], bih[1] + bhh[1], bih[2]])[None, :]  # (1, 3H)
    bhn = bhh[2][None, :]                                                           # (1, H)

    # Glue: embedding gather stays in plain JAX.
    embedded = emb_table[token_ids]                                   # (B, T, E)

    # (1) Input projection hoisted out of the recurrence: one big MXU matmul.
    gi = dense_bias(embedded.reshape(B * T, E), wih_cat, bi_fold).reshape(B, T, 3 * H)

    # (2) Sequential GRU recurrence (only h @ W_hh remains on the serial path).
    hseq, hfinal = gru_recurrence(gi, whh_cat, bhn)                   # (B, T, H), (B, H)

    # (3) Decoder hoisted out of the recurrence: one lane-dense matmul over all timesteps.
    logits = dense_bias(hseq.reshape(B * T, H), wdec, bdec).reshape(B, T, V)

    # Dropout: module default p=0 (eval mode) is the identity.
    # TODO(synk): training-mode dropout (p>0) would use pltpu.prng_seed/prng_random_bits.

    # PyTorch GRU returns hidden as (num_layers, B, H); num_layers=1 here.
    return logits, hfinal[None, :, :]


# ---------------------------------------------------------------------------
# Pure-JAX reference (lax.scan GRU, PyTorch gate equations) for correctness check.
# ---------------------------------------------------------------------------
def _reference_forward(token_ids, params):
    emb = params["embedding"][token_ids]     # (B, T, E)
    wih, whh, bih, bhh = params["wih"], params["whh"], params["bih"], params["bhh"]
    wdec, bdec = params["wdec"], params["bdec"]
    B = emb.shape[0]
    H = whh.shape[-1]

    def step(h, x_t):
        gi = [x_t @ wih[g] + bih[g] for g in range(3)]
        gh = [h @ whh[g] + bhh[g] for g in range(3)]
        r = jax.nn.sigmoid(gi[0] + gh[0])
        z = jax.nn.sigmoid(gi[1] + gh[1])
        n = jnp.tanh(gi[2] + r * gh[2])
        h_new = (1.0 - z) * n + z * h
        return h_new, h_new

    h0 = jnp.zeros((B, H), jnp.float32)
    h_last, hs = jax.lax.scan(step, h0, jnp.swapaxes(emb, 0, 1))
    hs = jnp.swapaxes(hs, 0, 1)              # (B, T, H)
    logits = hs @ wdec + bdec
    return logits, h_last[None]


def init_params(key, vocab_size, embedding_dim, hidden_dim):
    """Deterministic synthetic parameters with the shapes nn.Embedding/GRU/Linear imply."""
    ks = jax.random.split(key, 7)
    bound = 1.0 / jnp.sqrt(hidden_dim)
    u = lambda k, shape, b: jax.random.uniform(k, shape, jnp.float32, -b, b)
    return {
        # nn.Embedding(len(vocab), embedding_dimension): weight (V, E), N(0, 1)
        "embedding": jax.random.normal(ks[0], (vocab_size, embedding_dim), jnp.float32),
        # nn.GRU(E, H): weight_ih_l0 (3H, E) stored pre-transposed per gate -> (3, E, H)
        "wih": u(ks[1], (3, embedding_dim, hidden_dim), bound),
        # weight_hh_l0 (3H, H) pre-transposed per gate -> (3, H, H)
        "whh": u(ks[2], (3, hidden_dim, hidden_dim), bound),
        "bih": u(ks[3], (3, hidden_dim), bound),
        "bhh": u(ks[4], (3, hidden_dim), bound),
        # nn.Linear(H, V): weight (V, H) pre-transposed -> (H, V), bias (V,) -> (1, V)
        "wdec": u(ks[5], (hidden_dim, vocab_size), bound),
        "bdec": u(ks[6], (1, vocab_size), bound),
    }


if __name__ == "__main__":
    B, T = 2, 8            # batch, sequence length
    VOCAB = 16             # len(vocab) (incl. PAD/START/END dummies)
    EMB_DIM = 32           # embedding_dimension
    HID_DIM = 32           # hidden_dimension (num_layers=1, rnn_type='gru')

    key = jax.random.PRNGKey(0)
    k_tok, k_par = jax.random.split(key)
    params = init_params(k_par, VOCAB, EMB_DIM, HID_DIM)
    token_ids = jax.random.randint(k_tok, (B, T), 0, VOCAB, dtype=jnp.int32)

    logits, hidden = language_model_forward(token_ids, params)
    jax.block_until_ready((logits, hidden))

    ref_logits, ref_hidden = _reference_forward(token_ids, params)
    assert logits.shape == (B, T, VOCAB) and hidden.shape == (1, B, HID_DIM)
    assert jnp.allclose(logits, ref_logits, atol=1e-4, rtol=1e-4)
    assert jnp.allclose(hidden, ref_hidden, atol=1e-4, rtol=1e-4)

    print("KERNEL_OK")
</pallas_src>

<mosaic_0001>
module attributes {stable_mosaic.version = 11 : i64} {
  func.func @_dense_bias_kernel(%arg0: i32, %arg1: memref<16x32xf32, #tpu.memory_space<vmem>>, %arg2: memref<32x96xf32, #tpu.memory_space<vmem>>, %arg3: memref<1x96xf32, #tpu.memory_space<vmem>>, %arg4: memref<16x96xf32, #tpu.memory_space<vmem>>) attributes {dimension_semantics = [#tpu.dimension_semantics<parallel>], iteration_bounds = array<i64: 1>, scalar_prefetch = 0 : i64, scratch_operands = 0 : i64, tpu.core_type = #tpu.core_type<tc>, window_params = [{transform_indices = @transform_0, window_bounds = array<i64: 16, 32>}, {pipeline_mode = #tpu.pipeline_mode<synchronous>, transform_indices = @transform_1, window_bounds = array<i64: 32, 96>}, {pipeline_mode = #tpu.pipeline_mode<synchronous>, transform_indices = @transform_2, window_bounds = array<i64: 1, 96>}, {transform_indices = @transform_3, window_bounds = array<i64: 16, 96>}]} {
    %c0 = arith.constant 0 : index
    %c0_0 = arith.constant 0 : index
    %0 = vector.load %arg1[%c0, %c0_0] : memref<16x32xf32, #tpu.memory_space<vmem>>, vector<16x32xf32>
    %c0_1 = arith.constant 0 : index
    %c0_2 = arith.constant 0 : index
    %1 = vector.load %arg2[%c0_1, %c0_2] : memref<32x96xf32, #tpu.memory_space<vmem>>, vector<32x96xf32>
    %cst = arith.constant dense<0.000000e+00> : vector<16x96xf32>
    %2 = tpu.matmul %0, %1, %cst {dimension_numbers = #tpu.dot_dimension_numbers<[1], [0], [0], [1], [0, 0, 1, 1], [], []>} : vector<16x32xf32>, vector<32x96xf32>, vector<16x96xf32> -> vector<16x96xf32>
    %c0_3 = arith.constant 0 : index
    %c0_4 = arith.constant 0 : index
    %3 = vector.load %arg3[%c0_3, %c0_4] : memref<1x96xf32, #tpu.memory_space<vmem>>, vector<1x96xf32>
    %4 = vector.broadcast %3 : vector<1x96xf32> to vector<16x96xf32>
    %5 = arith.addf %2, %4 : vector<16x96xf32>
    %c0_5 = arith.constant 0 : index
    %c0_6 = arith.constant 0 : index
    %6 = vector.load %arg4[%c0_5, %c0_6] : memref<16x96xf32, #tpu.memory_space<vmem>>, vector<16x96xf32>
    tpu.vector_store %arg4[%c0_5, %c0_6], %5 {strides = array<i32>} : memref<16x96xf32, #tpu.memory_space<vmem>>, vector<16x96xf32>,
    return
  }
  func.func @transform_0(%arg0: i32) -> (i32, i32) {
    %c0_i32 = arith.constant 0 : i32
    %c0_i32_0 = arith.constant 0 : i32
    return %arg0, %c0_i32 : i32, i32
  }
  func.func @transform_1(%arg0: i32) -> (i32, i32) {
    %c0_i32 = arith.constant 0 : i32
    %c0_i32_0 = arith.constant 0 : i32
    %c0_i32_1 = arith.constant 0 : i32
    return %c0_i32, %c0_i32_0 : i32, i32
  }
  func.func @transform_2(%arg0: i32) -> (i32, i32) {
    %c0_i32 = arith.constant 0 : i32
    %c0_i32_0 = arith.constant 0 : i32
    %c0_i32_1 = arith.constant 0 : i32
    return %c0_i32, %c0_i32_0 : i32, i32
  }
  func.func @transform_3(%arg0: i32) -> (i32, i32) {
    %c0_i32 = arith.constant 0 : i32
    %c0_i32_0 = arith.constant 0 : i32
    return %arg0, %c0_i32 : i32, i32
  }
}

module attributes {stable_mosaic.version = 11 : i64} {
  func.func @kernel(%arg0: i32, %arg1: memref<2x8x96xf32, #tpu.memory_space<vmem>>, %arg2: memref<32x96xf32, #tpu.memory_space<vmem>>, %arg3: memref<1x32xf32, #tpu.memory_space<vmem>>, %arg4: memref<2x8x32xf32, #tpu.memory_space<vmem>>, %arg5: memref<2x32xf32, #tpu.memory_space<vmem>>, %arg6: memref<2x32xf32, #tpu.memory_space<vmem>>) attributes {dimension_semantics = [#tpu.dimension_semantics<arbitrary>], iteration_bounds = array<i64: 1>, scalar_prefetch = 0 : i64, scratch_operands = 1 : i64, tpu.core_type = #tpu.core_type<tc>, window_params = [{transform_indices = @transform_0, window_bounds = array<i64: 2, 8, 96>}, {pipeline_mode = #tpu.pipeline_mode<synchronous>, transform_indices = @transform_1, window_bounds = array<i64: 32, 96>}, {pipeline_mode = #tpu.pipeline_mode<synchronous>, transform_indices = @transform_2, window_bounds = array<i64: 1, 32>}, {transform_indices = @transform_3, window_bounds = array<i64: 2, 8, 32>}, {pipeline_mode = #tpu.pipeline_mode<synchronous>, transform_indices = @transform_4, window_bounds = array<i64: 2, 32>}]} {
    %c0_i32 = arith.constant 0 : i32
    %0 = arith.cmpi eq, %arg0, %c0_i32 : i32
    %1 = arith.extui %0 : i1 to i32
    %c0_i32_0 = arith.constant 0 : i32
    %2 = arith.cmpi ne, %1, %c0_i32_0 : i32
    scf.if %2 {
      %cst_74 = arith.constant 0.000000e+00 : f32
      %266 = vector.broadcast %cst_74 : f32 to vector<2x32xf32>
      %c0_75 = arith.constant 0 : index
      %c0_76 = arith.constant 0 : index
      %267 = vector.load %arg6[%c0_75, %c0_76] : memref<2x32xf32, #tpu.memory_space<vmem>>, vector<2x32xf32>
      tpu.vector_store %arg6[%c0_75, %c0_76], %266 {strides = array<i32>} : memref<2x32xf32, #tpu.memory_space<vmem>>, vector<2x32xf32>,
    } else {
    }
    %c0 = arith.constant 0 : index
    %c0_1 = arith.constant 0 : index
    %3 = vector.load %arg6[%c0, %c0_1] : memref<2x32xf32, #tpu.memory_space<vmem>>, vector<2x32xf32>
    %c0_2 = arith.constant 0 : index
    %c0_3 = arith.constant 0 : index
    %4 = vector.load %arg2[%c0_2, %c0_3] : memref<32x96xf32, #tpu.memory_space<vmem>>, vector<32x96xf32>
    %c0_4 = arith.constant 0 : index
    %c0_5 = arith.constant 0 : index
    %5 = vector.load %arg3[%c0_4, %c0_5] : memref<1x32xf32, #tpu.memory_space<vmem>>, vector<1x32xf32>
    %c0_6 = arith.constant 0 : index
    %c0_7 = arith.constant 0 : index
    %c0_8 = arith.constant 0 : index
    %6 = vector.load %arg1[%c0_6, %c0_7, %c0_8] : memref<2x8x96xf32, #tpu.memory_space<vmem>>, vector<2x1x96xf32>
    %7 = vector.shape_cast %6 : vector<2x1x96xf32> to vector<2x96xf32>
    %cst = arith.constant dense<0.000000e+00> : vector<2x96xf32>
    %8 = tpu.matmul %3, %4, %cst {dimension_numbers = #tpu.dot_dimension_numbers<[1], [0], [0], [1], [0, 0, 1, 1], [], []>} : vector<2x32xf32>, vector<32x96xf32>, vector<2x96xf32> -> vector<2x96xf32>
    %9 = vector.extract_strided_slice %7 {offsets = [0, 0], sizes = [2, 32], strides = [1, 1]} : vector<2x96xf32> to vector<2x32xf32>
    %10 = vector.extract_strided_slice %8 {offsets = [0, 0], sizes = [2, 32], strides = [1, 1]} : vector<2x96xf32> to vector<2x32xf32>
    %11 = arith.addf %9, %10 : vector<2x32xf32>
    %12 = arith.negf %11 : vector<2x32xf32>
    %13 = math.exp %12 : vector<2x32xf32>
    %cst_9 = arith.constant 1.000000e+00 : f32
    %14 = vector.broadcast %cst_9 : f32 to vector<2x32xf32>
    %15 = arith.addf %14, %13 : vector<2x32xf32>
    %16 = arith.divf %14, %15 : vector<2x32xf32>
    %17 = vector.extract_strided_slice %7 {offsets = [0, 32], sizes = [2, 32], strides = [1, 1]} : vector<2x96xf32> to vector<2x32xf32>
    %18 = vector.extract_strided_slice %8 {offsets = [0, 32], sizes = [2, 32], strides = [1, 1]} : vector<2x96xf32> to vector<2x32xf32>
    %19 = arith.addf %17, %18 : vector<2x32xf32>
    %20 = arith.negf %19 : vector<2x32xf32>
    %21 = math.exp %20 : vector<2x32xf32>
    %cst_10 = arith.constant 1.000000e+00 : f32
    %22 = vector.broadcast %cst_10 : f32 to vector<2x32xf32>
    %23 = arith.addf %22, %21 : vector<2x32xf32>
    %24 = arith.divf %22, %23 : vector<2x32xf32>
    %25 = vector.extract_strided_slice %7 {offsets = [0, 64], sizes = [2, 32], strides = [1, 1]} : vector<2x96xf32> to vector<2x32xf32>
    %26 = vector.extract_strided_slice %8 {offsets = [0, 64], sizes = [2, 32], strides = [1, 1]} : vector<2x96xf32> to vector<2x32xf32>
    %27 = vector.broadcast %5 : vector<1x32xf32> to vector<2x32xf32>
    %28 = arith.addf %26, %27 : vector<2x32xf32>
    %29 = arith.mulf %16, %28 : vector<2x32xf32>
    %30 = arith.addf %25, %29 : vector<2x32xf32>
    %31 = math.tanh %30 : vector<2x32xf32>
    %32 = arith.subf %3, %31 : vector<2x32xf32>
    %33 = arith.mulf %24, %32 : vector<2x32xf32>
    %34 = arith.addf %31, %33 : vector<2x32xf32>
    %c0_11 = arith.constant 0 : index
    %c0_12 = arith.constant 0 : index
    %c0_13 = arith.constant 0 : index
    %35 = vector.load %arg4[%c0_11, %c0_12, %c0_13] : memref<2x8x32xf32, #tpu.memory_space<vmem>>, vector<2x1x32xf32>
    %36 = vector.shape_cast %35 : vector<2x1x32xf32> to vector<2x32xf32>
    %37 = vector.shape_cast %34 : vector<2x32xf32> to vector<2x1x32xf32>
    tpu.vector_store %arg4[%c0_11, %c0_12, %c0_13], %37 {strides = array<i32>} : memref<2x8x32xf32, #tpu.memory_space<vmem>>, vector<2x1x32xf32>,
    %c0_14 = arith.constant 0 : index
    %c1 = arith.constant 1 : index
    %c0_15 = arith.constant 0 : index
    %38 = vector.load %arg1[%c0_14, %c1, %c0_15] : memref<2x8x96xf32, #tpu.memory_space<vmem>>, vector<2x1x96xf32>
    %39 = vector.shape_cast %38 : vector<2x1x96xf32> to vector<2x96xf32>
    %cst_16 = arith.constant dense<0.000000e+00> : vector<2x96xf32>
    %40 = tpu.matmul %34, %4, %cst_16 {dimension_numbers = #tpu.dot_dimension_numbers<[1], [0], [0], [1], [0, 0, 1, 1], [], []>} : vector<2x32xf32>, vector<32x96xf32>, vector<2x96xf32> -> vector<2x96xf32>
    %41 = vector.extract_strided_slice %39 {offsets = [0, 0], sizes = [2, 32], strides = [1, 1]} : vector<2x96xf32> to vector<2x32xf32>
    %42 = vector.extract_strided_slice %40 {offsets = [0, 0], sizes = [2, 32], strides = [1, 1]} : vector<2x96xf32> to vector<2x32xf32>
    %43 = arith.addf %41, %42 : vector<2x32xf32>
    %44 = arith.negf %43 : vector<2x32xf32>
    %45 = math.exp %44 : vector<2x32xf32>
    %cst_17 = arith.constant 1.000000e+00 : f32
    %46 = vector.broadcast %cst_17 : f32 to vector<2x32xf32>
    %47 = arith.addf %46, %45 : vector<2x32xf32>
    %48 = arith.divf %46, %47 : vector<2x32xf32>
    %49 = vector.extract_strided_slice %39 {offsets = [0, 32], sizes = [2, 32], strides = [1, 1]} : vector<2x96xf32> to vector<2x32xf32>
    %50 = vector.extract_strided_slice %40 {offsets = [0, 32], sizes = [2, 32], strides = [1, 1]} : vector<2x96xf32> to vector<2x32xf32>
    %51 = arith.addf %49, %50 : vector<2x32xf32>
    %52 = arith.negf %51 : vector<2x32xf32>
    %53 = math.exp %52 : vector<2x32xf32>
    %cst_18 = arith.constant 1.000000e+00 : f32
    %54 = vector.broadcast %cst_18 : f32 to vector<2x32xf32>
    %55 = arith.addf %54, %53 : vector<2x32xf32>
    %56 = arith.divf %54, %55 : vector<2x32xf32>
    %57 = vector.extract_strided_slice %39 {offsets = [0, 64], sizes = [2, 32], strides = [1, 1]} : vector<2x96xf32> to vector<2x32xf32>
    %58 = vector.extract_strided_slice %40 {offsets = [0, 64], sizes = [2, 32], strides = [1, 1]} : vector<2x96xf32> to vector<2x32xf32>
    %59 = vector.broadcast %5 : vector<1x32xf32> to vector<2x32xf32>
    %60 = arith.addf %58, %59 : vector<2x32xf32>
    %61 = arith.mulf %48, %60 : vector<2x32xf32>
    %62 = arith.addf %57, %61 : vector<2x32xf32>
    %63 = math.tanh %62 : vector<2x32xf32>
    %64 = arith.subf %34, %63 : vector<2x32xf32>
    %65 = arith.mulf %56, %64 : vector<2x32xf32>
    %66 = arith.addf %63, %65 : vector<2x32xf32>
    %c0_19 = arith.constant 0 : index
    %c1_20 = arith.constant 1 : index
    %c0_21 = arith.constant 0 : index
    %67 = vector.load %arg4[%c0_19, %c1_20, %c0_21] : memref<2x8x32xf32, #tpu.memory_space<vmem>>, vector<2x1x32xf32>
    %68 = vector.shape_cast %67 : vector<2x1x32xf32> to vector<2x32xf32>
    %69 = vector.shape_cast %66 : vector<2x32xf32> to vector<2x1x32xf32>
    tpu.vector_store %arg4[%c0_19, %c1_20, %c0_21], %69 {strides = array<i32>} : memref<2x8x32xf32, #tpu.memory_space<vmem>>, vector<2x1x32xf32>,
    %c0_22 = arith.constant 0 : index
    %c2 = arith.constant 2 : index
    %c0_23 = arith.constant 0 : index
    %70 = vector.load %arg1[%c0_22, %c2, %c0_23] : memref<2x8x96xf32, #tpu.memory_space<vmem>>, vector<2x1x96xf32>
    %71 = vector.shape_cast %70 : vector<2x1x96xf32> to vector<2x96xf32>
    %cst_24 = arith.constant dense<0.000000e+00> : vector<2x96xf32>
    %72 = tpu.matmul %66, %4, %cst_24 {dimension_numbers = #tpu.dot_dimension_numbers<[1], [0], [0], [1], [0, 0, 1, 1], [], []>} : vector<2x32xf32>, vector<32x96xf32>, vector<2x96xf32> -> vector<2x96xf32>
    %73 = vector.extract_strided_slice %71 {offsets = [0, 0], sizes = [2, 32], strides = [1, 1]} : vector<2x96xf32> to vector<2x32xf32>
    %74 = vector.extract_strided_slice %72 {offsets = [0, 0], sizes = [2, 32], strides = [1, 1]} : vector<2x96xf32> to vector<2x32xf32>
    %75 = arith.addf %73, %74 : vector<2x32xf32>
    %76 = arith.negf %75 : vector<2x32xf32>
    %77 = math.exp %76 : vector<2x32xf32>
    %cst_25 = arith.constant 1.000000e+00 : f32
    %78 = vector.broadcast %cst_25 : f32 to vector<2x32xf32>
    %79 = arith.addf %78, %77 : vector<2x32xf32>
    %80 = arith.divf %78, %79 : vector<2x32xf32>
    %81 = vector.extract_strided_slice %71 {offsets = [0, 32], sizes = [2, 32], strides = [1, 1]} : vector<2x96xf32> to vector<2x32xf32>
    %82 = vector.extract_strided_slice %72 {offsets = [0, 32], sizes = [2, 32], strides = [1, 1]} : vector<2x96xf32> to vector<2x32xf32>
    %83 = arith.addf %81, %82 : vector<2x32xf32>
    %84 = arith.negf %83 : vector<2x32xf32>
    %85 = math.exp %84 : vector<2x32xf32>
    %cst_26 = arith.constant 1.000000e+00 : f32
    %86 = vector.broadcast %cst_26 : f32 to vector<2x32xf32>
    %87 = arith.addf %86, %85 : vector<2x32xf32>
    %88 = arith.divf %86, %87 : vector<2x32xf32>
    %89 = vector.extract_strided_slice %71 {offsets = [0, 64], sizes = [2, 32], strides = [1, 1]} : vector<2x96xf32> to vector<2x32xf32>
    %90 = vector.extract_strided_slice %72 {offsets = [0, 64], sizes = [2, 32], strides = [1, 1]} : vector<2x96xf32> to vector<2x32xf32>
    %91 = vector.broadcast %5 : vector<1x32xf32> to vector<2x32xf32>
    %92 = arith.addf %90, %91 : vector<2x32xf32>
    %93 = arith.mulf %80, %92 : vector<2x32xf32>
    %94 = arith.addf %89, %93 : vector<2x32xf32>
    %95 = math.tanh %94 : vector<2x32xf32>
    %96 = arith.subf %66, %95 : vector<2x32xf32>
    %97 = arith.mulf %88, %96 : vector<2x32xf32>
    %98 = arith.addf %95, %97 : vector<2x32xf32>
    %c0_27 = arith.constant 0 : index
    %c2_28 = arith.constant 2 : index
    %c0_29 = arith.constant 0 : index
    %99 = vector.load %arg4[%c0_27, %c2_28, %c0_29] : memref<2x8x32xf32, #tpu.memory_space<vmem>>, vector<2x1x32xf32>
    %100 = vector.shape_cast %99 : vector<2x1x32xf32> to vector<2x32xf32>
    %101 = vector.shape_cast %98 : vector<2x32xf32> to vector<2x1x32xf32>
    tpu.vector_store %arg4[%c0_27, %c2_28, %c0_29], %101 {strides = array<i32>} : memref<2x8x32xf32, #tpu.memory_space<vmem>>, vector<2x1x32xf32>,
    %c0_30 = arith.constant 0 : index
    %c3 = arith.constant 3 : index
    %c0_31 = arith.constant 0 : index
    %102 = vector.load %arg1[%c0_30, %c3, %c0_31] : memref<2x8x96xf32, #tpu.memory_space<vmem>>, vector<2x1x96xf32>
    %103 = vector.shape_cast %102 : vector<2x1x96xf32> to vector<2x96xf32>
    %cst_32 = arith.constant dense<0.000000e+00> : vector<2x96xf32>
    %104 = tpu.matmul %98, %4, %cst_32 {dimension_numbers = #tpu.dot_dimension_numbers<[1], [0], [0], [1], [0, 0, 1, 1], [], []>} : vector<2x32xf32>, vector<32x96xf32>, vector<2x96xf32> -> vector<2x96xf32>
    %105 = vector.extract_strided_slice %103 {offsets = [0, 0], sizes = [2, 32], strides = [1, 1]} : vector<2x96xf32> to vector<2x32xf32>
    %106 = vector.extract_strided_slice %104 {offsets = [0, 0], sizes = [2, 32], strides = [1, 1]} : vector<2x96xf32> to vector<2x32xf32>
    %107 = arith.addf %105, %106 : vector<2x32xf32>
    %108 = arith.negf %107 : vector<2x32xf32>
    %109 = math.exp %108 : vector<2x32xf32>
    %cst_33 = arith.constant 1.000000e+00 : f32
    %110 = vector.broadcast %cst_33 : f32 to vector<2x32xf32>
    %111 = arith.addf %110, %109 : vector<2x32xf32>
    %112 = arith.divf %110, %111 : vector<2x32xf32>
    %113 = vector.extract_strided_slice %103 {offsets = [0, 32], sizes = [2, 32], strides = [1, 1]} : vector<2x96xf32> to vector<2x32xf32>
    %114 = vector.extract_strided_slice %104 {offsets = [0, 32], sizes = [2, 32], strides = [1, 1]} : vector<2x96xf32> to vector<2x32xf32>
    %115 = arith.addf %113, %114 : vector<2x32xf32>
    %116 = arith.negf %115 : vector<2x32xf32>
    %117 = math.exp %116 : vector<2x32xf32>
    %cst_34 = arith.constant 1.000000e+00 : f32
    %118 = vector.broadcast %cst_34 : f32 to vector<2x32xf32>
    %119 = arith.addf %118, %117 : vector<2x32xf32>
    %120 = arith.divf %118, %119 : vector<2x32xf32>
    %121 = vector.extract_strided_slice %103 {offsets = [0, 64], sizes = [2, 32], strides = [1, 1]} : vector<2x96xf32> to vector<2x32xf32>
    %122 = vector.extract_strided_slice %104 {offsets = [0, 64], sizes = [2, 32], strides = [1, 1]} : vector<2x96xf32> to vector<2x32xf32>
    %123 = vector.broadcast %5 : vector<1x32xf32> to vector<2x32xf32>
    %124 = arith.addf %122, %123 : vector<2x32xf32>
    %125 = arith.mulf %112, %124 : vector<2x32xf32>
    %126 = arith.addf %121, %125 : vector<2x32xf32>
    %127 = math.tanh %126 : vector<2x32xf32>
    %128 = arith.subf %98, %127 : vector<2x32xf32>
    %129 = arith.mulf %120, %128 : vector<2x32xf32>
    %130 = arith.addf %127, %129 : vector<2x32xf32>
    %c0_35 = arith.constant 0 : index
    %c3_36 = arith.constant 3 : index
    %c0_37 = arith.constant 0 : index
    %131 = vector.load %arg4[%c0_35, %c3_36, %c0_37] : memref<2x8x32xf32, #tpu.memory_space<vmem>>, vector<2x1x32xf32>
    %132 = vector.shape_cast %131 : vector<2x1x32xf32> to vector<2x32xf32>
    %133 = vector.shape_cast %130 : vector<2x32xf32> to vector<2x1x32xf32>
    tpu.vector_store %arg4[%c0_35, %c3_36, %c0_37], %133 {strides = array<i32>} : memref<2x8x32xf32, #tpu.memory_space<vmem>>, vector<2x1x32xf32>,
    %c0_38 = arith.constant 0 : index
    %c4 = arith.constant 4 : index
    %c0_39 = arith.constant 0 : index
    %134 = vector.load %arg1[%c0_38, %c4, %c0_39] : memref<2x8x96xf32, #tpu.memory_space<vmem>>, vector<2x1x96xf32>
    %135 = vector.shape_cast %134 : vector<2x1x96xf32> to vector<2x96xf32>
    %cst_40 = arith.constant dense<0.000000e+00> : vector<2x96xf32>
    %136 = tpu.matmul %130, %4, %cst_40 {dimension_numbers = #tpu.dot_dimension_numbers<[1], [0], [0], [1], [0, 0, 1, 1], [], []>} : vector<2x32xf32>, vector<32x96xf32>, vector<2x96xf32> -> vector<2x96xf32>
    %137 = vector.extract_strided_slice %135 {offsets = [0, 0], sizes = [2, 32], strides = [1, 1]} : vector<2x96xf32> to vector<2x32xf32>
    %138 = vector.extract_strided_slice %136 {offsets = [0, 0], sizes = [2, 32], strides = [1, 1]} : vector<2x96xf32> to vector<2x32xf32>
    %139 = arith.addf %137, %138 : vector<2x32xf32>
    %140 = arith.negf %139 : vector<2x32xf32>
    %141 = math.exp %140 : vector<2x32xf32>
    %cst_41 = arith.constant 1.000000e+00 : f32
    %142 = vector.broadcast %cst_41 : f32 to vector<2x32xf32>
    %143 = arith.addf %142, %141 : vector<2x32xf32>
    %144 = arith.divf %142, %143 : vector<2x32xf32>
    %145 = vector.extract_strided_slice %135 {offsets = [0, 32], sizes = [2, 32], strides = [1, 1]} : vector<2x96xf32> to vector<2x32xf32>
    %146 = vector.extract_strided_slice %136 {offsets = [0, 32], sizes = [2, 32], strides = [1, 1]} : vector<2x96xf32> to vector<2x32xf32>
    %147 = arith.addf %145, %146 : vector<2x32xf32>
    %148 = arith.negf %147 : vector<2x32xf32>
    %149 = math.exp %148 : vector<2x32xf32>
    %cst_42 = arith.constant 1.000000e+00 : f32
    %150 = vector.broadcast %cst_42 : f32 to vector<2x32xf32>
    %151 = arith.addf %150, %149 : vector<2x32xf32>
    %152 = arith.divf %150, %151 : vector<2x32xf32>
    %153 = vector.extract_strided_slice %135 {offsets = [0, 64], sizes = [2, 32], strides = [1, 1]} : vector<2x96xf32> to vector<2x32xf32>
    %154 = vector.extract_strided_slice %136 {offsets = [0, 64], sizes = [2, 32], strides = [1, 1]} : vector<2x96xf32> to vector<2x32xf32>
    %155 = vector.broadcast %5 : vector<1x32xf32> to vector<2x32xf32>
    %156 = arith.addf %154, %155 : vector<2x32xf32>
    %157 = arith.mulf %144, %156 : vector<2x32xf32>
    %158 = arith.addf %153, %157 : vector<2x32xf32>
    %159 = math.tanh %158 : vector<2x32xf32>
    %160 = arith.subf %130, %159 : vector<2x32xf32>
    %161 = arith.mulf %152, %160 : vector<2x32xf32>
    %162 = arith.addf %159, %161 : vector<2x32xf32>
    %c0_43 = arith.constant 0 : index
    %c4_44 = arith.constant 4 : index
    %c0_45 = arith.constant 0 : index
    %163 = vector.load %arg4[%c0_43, %c4_44, %c0_45] : memref<2x8x32xf32, #tpu.memory_space<vmem>>, vector<2x1x32xf32>
    %164 = vector.shape_cast %163 : vector<2x1x32xf32> to vector<2x32xf32>
    %165 = vector.shape_cast %162 : vector<2x32xf32> to vector<2x1x32xf32>
    tpu.vector_store %arg4[%c0_43, %c4_44, %c0_45], %165 {strides = array<i32>} : memref<2x8x32xf32, #tpu.memory_space<vmem>>, vector<2x1x32xf32>,
    %c0_46 = arith.constant 0 : index
    %c5 = arith.constant 5 : index
    %c0_47 = arith.constant 0 : index
    %166 = vector.load %arg1[%c0_46, %c5, %c0_47] : memref<2x8x96xf32, #tpu.memory_space<vmem>>, vector<2x1x96xf32>
    %167 = vector.shape_cast %166 : vector<2x1x96xf32> to vector<2x96xf32>
    %cst_48 = arith.constant dense<0.000000e+00> : vector<2x96xf32>
    %168 = tpu.matmul %162, %4, %cst_48 {dimension_numbers = #tpu.dot_dimension_numbers<[1], [0], [0], [1], [0, 0, 1, 1], [], []>} : vector<2x32xf32>, vector<32x96xf32>, vector<2x96xf32> -> vector<2x96xf32>
    %169 = vector.extract_strided_slice %167 {offsets = [0, 0], sizes = [2, 32], strides = [1, 1]} : vector<2x96xf32> to vector<2x32xf32>
    %170 = vector.extract_strided_slice %168 {offsets = [0, 0], sizes = [2, 32], strides = [1, 1]} : vector<2x96xf32> to vector<2x32xf32>
    %171 = arith.addf %169, %170 : vector<2x32xf32>
    %172 = arith.negf %171 : vector<2x32xf32>
    %173 = math.exp %172 : vector<2x32xf32>
    %cst_49 = arith.constant 1.000000e+00 : f32
    %174 = vector.broadcast %cst_49 : f32 to vector<2x32xf32>
    %175 = arith.addf %174, %173 : vector<2x32xf32>
    %176 = arith.divf %174, %175 : vector<2x32xf32>
    %177 = vector.extract_strided_slice %167 {offsets = [0, 32], sizes = [2, 32], strides = [1, 1]} : vector<2x96xf32> to vector<2x32xf32>
    %178 = vector.extract_strided_slice %168 {offsets = [0, 32], sizes = [2, 32], strides = [1, 1]} : vector<2x96xf32> to vector<2x32xf32>
    %179 = arith.addf %177, %178 : vector<2x32xf32>
    %180 = arith.negf %179 : vector<2x32xf32>
    %181 = math.exp %180 : vector<2x32xf32>
    %cst_50 = arith.constant 1.000000e+00 : f32
    %182 = vector.broadcast %cst_50 : f32 to vector<2x32xf32>
    %183 = arith.addf %182, %181 : vector<2x32xf32>
    %184 = arith.divf %182, %183 : vector<2x32xf32>
    %185 = vector.extract_strided_slice %167 {offsets = [0, 64], sizes = [2, 32], strides = [1, 1]} : vector<2x96xf32> to vector<2x32xf32>
    %186 = vector.extract_strided_slice %168 {offsets = [0, 64], sizes = [2, 32], strides = [1, 1]} : vector<2x96xf32> to vector<2x32xf32>
    %187 = vector.broadcast %5 : vector<1x32xf32> to vector<2x32xf32>
    %188 = arith.addf %186, %187 : vector<2x32xf32>
    %189 = arith.mulf %176, %188 : vector<2x32xf32>
    %190 = arith.addf %185, %189 : vector<2x32xf32>
    %191 = math.tanh %190 : vector<2x32xf32>
    %192 = arith.subf %162, %191 : vector<2x32xf32>
    %193 = arith.mulf %184, %192 : vector<2x32xf32>
    %194 = arith.addf %191, %193 : vector<2x32xf32>
    %c0_51 = arith.constant 0 : index
    %c5_52 = arith.constant 5 : index
    %c0_53 = arith.constant 0 : index
    %195 = vector.load %arg4[%c0_51, %c5_52, %c0_53] : memref<2x8x32xf32, #tpu.memory_space<vmem>>, vector<2x1x32xf32>
    %196 = vector.shape_cast %195 : vector<2x1x32xf32> to vector<2x32xf32>
    %197 = vector.shape_cast %194 : vector<2x32xf32> to vector<2x1x32xf32>
    tpu.vector_store %arg4[%c0_51, %c5_52, %c0_53], %197 {strides = array<i32>} : memref<2x8x32xf32, #tpu.memory_space<vmem>>, vector<2x1x32xf32>,
    %c0_54 = arith.constant 0 : index
    %c6 = arith.constant 6 : index
    %c0_55 = arith.constant 0 : index
    %198 = vector.load %arg1[%c0_54, %c6, %c0_55] : memref<2x8x96xf32, #tpu.memory_space<vmem>>, vector<2x1x96xf32>
    %199 = vector.shape_cast %198 : vector<2x1x96xf32> to vector<2x96xf32>
    %cst_56 = arith.constant dense<0.000000e+00> : vector<2x96xf32>
    %200 = tpu.matmul %194, %4, %cst_56 {dimension_numbers = #tpu.dot_dimension_numbers<[1], [0], [0], [1], [0, 0, 1, 1], [], []>} : vector<2x32xf32>, vector<32x96xf32>, vector<2x96xf32> -> vector<2x96xf32>
    %201 = vector.extract_strided_slice %199 {offsets = [0, 0], sizes = [2, 32], strides = [1, 1]} : vector<2x96xf32> to vector<2x32xf32>
    %202 = vector.extract_strided_slice %200 {offsets = [0, 0], sizes = [2, 32], strides = [1, 1]} : vector<2x96xf32> to vector<2x32xf32>
    %203 = arith.addf %201, %202 : vector<2x32xf32>
    %204 = arith.negf %203 : vector<2x32xf32>
    %205 = math.exp %204 : vector<2x32xf32>
    %cst_57 = arith.constant 1.000000e+00 : f32
    %206 = vector.broadcast %cst_57 : f32 to vector<2x32xf32>
    %207 = arith.addf %206, %205 : vector<2x32xf32>
    %208 = arith.divf %206, %207 : vector<2x32xf32>
    %209 = vector.extract_strided_slice %199 {offsets = [0, 32], sizes = [2, 32], strides = [1, 1]} : vector<2x96xf32> to vector<2x32xf32>
    %210 = vector.extract_strided_slice %200 {offsets = [0, 32], sizes = [2, 32], strides = [1, 1]} : vector<2x96xf32> to vector<2x32xf32>
    %211 = arith.addf %209, %210 : vector<2x32xf32>
    %212 = arith.negf %211 : vector<2x32xf32>
    %213 = math.exp %212 : vector<2x32xf32>
    %cst_58 = arith.constant 1.000000e+00 : f32
    %214 = vector.broadcast %cst_58 : f32 to vector<2x32xf32>
    %215 = arith.addf %214, %213 : vector<2x32xf32>
    %216 = arith.divf %214, %215 : vector<2x32xf32>
    %217 = vector.extract_strided_slice %199 {offsets = [0, 64], sizes = [2, 32], strides = [1, 1]} : vector<2x96xf32> to vector<2x32xf32>
    %218 = vector.extract_strided_slice %200 {offsets = [0, 64], sizes = [2, 32], strides = [1, 1]} : vector<2x96xf32> to vector<2x32xf32>
    %219 = vector.broadcast %5 : vector<1x32xf32> to vector<2x32xf32>
    %220 = arith.addf %218, %219 : vector<2x32xf32>
    %221 = arith.mulf %208, %220 : vector<2x32xf32>
    %222 = arith.addf %217, %221 : vector<2x32xf32>
    %223 = math.tanh %222 : vector<2x32xf32>
    %224 = arith.subf %194, %223 : vector<2x32xf32>
    %225 = arith.mulf %216, %224 : vector<2x32xf32>
    %226 = arith.addf %223, %225 : vector<2x32xf32>
    %c0_59 = arith.constant 0 : index
    %c6_60 = arith.constant 6 : index
    %c0_61 = arith.constant 0 : index
    %227 = vector.load %arg4[%c0_59, %c6_60, %c0_61] : memref<2x8x32xf32, #tpu.memory_space<vmem>>, vector<2x1x32xf32>
    %228 = vector.shape_cast %227 : vector<2x1x32xf32> to vector<2x32xf32>
    %229 = vector.shape_cast %226 : vector<2x32xf32> to vector<2x1x32xf32>
    tpu.vector_store %arg4[%c0_59, %c6_60, %c0_61], %229 {strides = array<i32>} : memref<2x8x32xf32, #tpu.memory_space<vmem>>, vector<2x1x32xf32>,
    %c0_62 = arith.constant 0 : index
    %c7 = arith.constant 7 : index
    %c0_63 = arith.constant 0 : index
    %230 = vector.load %arg1[%c0_62, %c7, %c0_63] : memref<2x8x96xf32, #tpu.memory_space<vmem>>, vector<2x1x96xf32>
    %231 = vector.shape_cast %230 : vector<2x1x96xf32> to vector<2x96xf32>
    %cst_64 = arith.constant dense<0.000000e+00> : vector<2x96xf32>
    %232 = tpu.matmul %226, %4, %cst_64 {dimension_numbers = #tpu.dot_dimension_numbers<[1], [0], [0], [1], [0, 0, 1, 1], [], []>} : vector<2x32xf32>, vector<32x96xf32>, vector<2x96xf32> -> vector<2x96xf32>
    %233 = vector.extract_strided_slice %231 {offsets = [0, 0], sizes = [2, 32], strides = [1, 1]} : vector<2x96xf32> to vector<2x32xf32>
    %234 = vector.extract_strided_slice %232 {offsets = [0, 0], sizes = [2, 32], strides = [1, 1]} : vector<2x96xf32> to vector<2x32xf32>
    %235 = arith.addf %233, %234 : vector<2x32xf32>
    %236 = arith.negf %235 : vector<2x32xf32>
    %237 = math.exp %236 : vector<2x32xf32>
    %cst_65 = arith.constant 1.000000e+00 : f32
    %238 = vector.broadcast %cst_65 : f32 to vector<2x32xf32>
    %239 = arith.addf %238, %237 : vector<2x32xf32>
    %240 = arith.divf %238, %239 : vector<2x32xf32>
    %241 = vector.extract_strided_slice %231 {offsets = [0, 32], sizes = [2, 32], strides = [1, 1]} : vector<2x96xf32> to vector<2x32xf32>
    %242 = vector.extract_strided_slice %232 {offsets = [0, 32], sizes = [2, 32], strides = [1, 1]} : vector<2x96xf32> to vector<2x32xf32>
    %243 = arith.addf %241, %242 : vector<2x32xf32>
    %244 = arith.negf %243 : vector<2x32xf32>
    %245 = math.exp %244 : vector<2x32xf32>
    %cst_66 = arith.constant 1.000000e+00 : f32
    %246 = vector.broadcast %cst_66 : f32 to vector<2x32xf32>
    %247 = arith.addf %246, %245 : vector<2x32xf32>
    %248 = arith.divf %246, %247 : vector<2x32xf32>
    %249 = vector.extract_strided_slice %231 {offsets = [0, 64], sizes = [2, 32], strides = [1, 1]} : vector<2x96xf32> to vector<2x32xf32>
    %250 = vector.extract_strided_slice %232 {offsets = [0, 64], sizes = [2, 32], strides = [1, 1]} : vector<2x96xf32> to vector<2x32xf32>
    %251 = vector.broadcast %5 : vector<1x32xf32> to vector<2x32xf32>
    %252 = arith.addf %250, %251 : vector<2x32xf32>
    %253 = arith.mulf %240, %252 : vector<2x32xf32>
    %254 = arith.addf %249, %253 : vector<2x32xf32>
    %255 = math.tanh %254 : vector<2x32xf32>
    %256 = arith.subf %226, %255 : vector<2x32xf32>
    %257 = arith.mulf %248, %256 : vector<2x32xf32>
    %258 = arith.addf %255, %257 : vector<2x32xf32>
    %c0_67 = arith.constant 0 : index
    %c7_68 = arith.constant 7 : index
    %c0_69 = arith.constant 0 : index
    %259 = vector.load %arg4[%c0_67, %c7_68, %c0_69] : memref<2x8x32xf32, #tpu.memory_space<vmem>>, vector<2x1x32xf32>
    %260 = vector.shape_cast %259 : vector<2x1x32xf32> to vector<2x32xf32>
    %261 = vector.shape_cast %258 : vector<2x32xf32> to vector<2x1x32xf32>
    tpu.vector_store %arg4[%c0_67, %c7_68, %c0_69], %261 {strides = array<i32>} : memref<2x8x32xf32, #tpu.memory_space<vmem>>, vector<2x1x32xf32>,
    %c0_70 = arith.constant 0 : index
    %c0_71 = arith.constant 0 : index
    %262 = vector.load %arg6[%c0_70, %c0_71] : memref<2x32xf32, #tpu.memory_space<vmem>>, vector<2x32xf32>
    tpu.vector_store %arg6[%c0_70, %c0_71], %258 {strides = array<i32>} : memref<2x32xf32, #tpu.memory_space<vmem>>, vector<2x32xf32>,
    %c0_i32_72 = arith.constant 0 : i32
    %263 = arith.cmpi eq, %arg0, %c0_i32_72 : i32
    %264 = arith.extui %263 : i1 to i32
    %c0_i32_73 = arith.constant 0 : i32
    %265 = arith.cmpi ne, %264, %c0_i32_73 : i32
    scf.if %265 {
      %c0_74 = arith.constant 0 : index
      %c0_75 = arith.constant 0 : index
      %266 = vector.load %arg5[%c0_74, %c0_75] : memref<2x32xf32, #tpu.memory_space<vmem>>, vector<2x32xf32>
      tpu.vector_store %arg5[%c0_74, %c0_75], %258 {strides = array<i32>} : memref<2x32xf32, #tpu.memory_space<vmem>>, vector<2x32xf32>,
    } else {
    }
    return
  }
  func.func @transform_0(%arg0: i32) -> (i32, i32, i32) {
    %c0_i32 = arith.constant 0 : i32
    %c0_i32_0 = arith.constant 0 : i32
    %c0_i32_1 = arith.constant 0 : i32
    return %c0_i32, %arg0, %c0_i32_0 : i32, i32, i32
  }
  func.func @transform_1(%arg0: i32) -> (i32, i32) {
    %c0_i32 = arith.constant 0 : i32
    %c0_i32_0 = arith.constant 0 : i32
    %c0_i32_1 = arith.constant 0 : i32
    return %c0_i32, %c0_i32_0 : i32, i32
  }
  func.func @transform_2(%arg0: i32) -> (i32, i32) {
    %c0_i32 = arith.constant 0 : i32
    %c0_i32_0 = arith.constant 0 : i32
    %c0_i32_1 = arith.constant 0 : i32
    return %c0_i32, %c0_i32_0 : i32, i32
  }
  func.func @transform_3(%arg0: i32) -> (i32, i32, i32) {
    %c0_i32 = arith.constant 0 : i32
    %c0_i32_0 = arith.constant 0 : i32
    %c0_i32_1 = arith.constant 0 : i32
    return %c0_i32, %arg0, %c0_i32_0 : i32, i32, i32
  }
  func.func @transform_4(%arg0: i32) -> (i32, i32) {
    %c0_i32 = arith.constant 0 : i32
    %c0_i32_0 = arith.constant 0 : i32
    %c0_i32_1 = arith.constant 0 : i32
    return %c0_i32, %c0_i32_0 : i32, i32
  }
}

module attributes {stable_mosaic.version = 11 : i64} {
  func.func @_dense_bias_kernel(%arg0: i32, %arg1: memref<16x32xf32, #tpu.memory_space<vmem>>, %arg2: memref<32x16xf32, #tpu.memory_space<vmem>>, %arg3: memref<1x16xf32, #tpu.memory_space<vmem>>, %arg4: memref<16x16xf32, #tpu.memory_space<vmem>>) attributes {dimension_semantics = [#tpu.dimension_semantics<parallel>], iteration_bounds = array<i64: 1>, scalar_prefetch = 0 : i64, scratch_operands = 0 : i64, tpu.core_type = #tpu.core_type<tc>, window_params = [{transform_indices = @transform_0, window_bounds = array<i64: 16, 32>}, {pipeline_mode = #tpu.pipeline_mode<synchronous>, transform_indices = @transform_1, window_bounds = array<i64: 32, 16>}, {pipeline_mode = #tpu.pipeline_mode<synchronous>, transform_indices = @transform_2, window_bounds = array<i64: 1, 16>}, {transform_indices = @transform_3, window_bounds = array<i64: 16, 16>}]} {
    %c0 = arith.constant 0 : index
    %c0_0 = arith.constant 0 : index
    %0 = vector.load %arg1[%c0, %c0_0] : memref<16x32xf32, #tpu.memory_space<vmem>>, vector<16x32xf32>
    %c0_1 = arith.constant 0 : index
    %c0_2 = arith.constant 0 : index
    %1 = vector.load %arg2[%c0_1, %c0_2] : memref<32x16xf32, #tpu.memory_space<vmem>>, vector<32x16xf32>
    %cst = arith.constant dense<0.000000e+00> : vector<16x16xf32>
    %2 = tpu.matmul %0, %1, %cst {dimension_numbers = #tpu.dot_dimension_numbers<[1], [0], [0], [1], [0, 0, 1, 1], [], []>} : vector<16x32xf32>, vector<32x16xf32>, vector<16x16xf32> -> vector<16x16xf32>
    %c0_3 = arith.constant 0 : index
    %c0_4 = arith.constant 0 : index
    %3 = vector.load %arg3[%c0_3, %c0_4] : memref<1x16xf32, #tpu.memory_space<vmem>>, vector<1x16xf32>
    %4 = vector.broadcast %3 : vector<1x16xf32> to vector<16x16xf32>
    %5 = arith.addf %2, %4 : vector<16x16xf32>
    %c0_5 = arith.constant 0 : index
    %c0_6 = arith.constant 0 : index
    %6 = vector.load %arg4[%c0_5, %c0_6] : memref<16x16xf32, #tpu.memory_space<vmem>>, vector<16x16xf32>
    tpu.vector_store %arg4[%c0_5, %c0_6], %5 {strides = array<i32>} : memref<16x16xf32, #tpu.memory_space<vmem>>, vector<16x16xf32>,
    return
  }
  func.func @transform_0(%arg0: i32) -> (i32, i32) {
    %c0_i32 = arith.constant 0 : i32
    %c0_i32_0 = arith.constant 0 : i32
    return %arg0, %c0_i32 : i32, i32
  }
  func.func @transform_1(%arg0: i32) -> (i32, i32) {
    %c0_i32 = arith.constant 0 : i32
    %c0_i32_0 = arith.constant 0 : i32
    %c0_i32_1 = arith.constant 0 : i32
    return %c0_i32, %c0_i32_0 : i32, i32
  }
  func.func @transform_2(%arg0: i32) -> (i32, i32) {
    %c0_i32 = arith.constant 0 : i32
    %c0_i32_0 = arith.constant 0 : i32
    %c0_i32_1 = arith.constant 0 : i32
    return %c0_i32, %c0_i32_0 : i32, i32
  }
  func.func @transform_3(%arg0: i32) -> (i32, i32) {
    %c0_i32 = arith.constant 0 : i32
    %c0_i32_0 = arith.constant 0 : i32
    return %arg0, %c0_i32 : i32, i32
  }
}

</mosaic_0001>

<llo_original>
// kernel: language_model_forward.5
$region0: #{language_model_forward.5}
  #allocation0 [shape = 'u32[]', space=smem, size = 0x4, offset = 0x4, fixed_abs, tag = 'smem constant byte address 0x4 - core index']
  #allocation1 [shape = 'u32[144,128]{1,0:T(1,128)}', space=vmem, size = 0x12000, scoped, tag = 'internal scratch']
  %s0 = inlined_call_operand.vmem [shape: f32[16,32], index: 0, kind: input, shape index: {}]
  %s1 = inlined_call_operand.vmem [shape: f32[32,16], index: 1, kind: input, shape index: {}]
  %s2 = inlined_call_operand.vmem [shape: f32[1,16], index: 2, kind: input, shape index: {}]
  %s3 = inlined_call_operand.hbm [shape: f32[16,16], index: 3, kind: output, shape index: {}]
  %s4 = sld [smem:[#allocation0]]
  $region22: #{language_model_forward.5} parent=0
    _
  %s6 = ssub.s32 1, %s4
  %s7 = scalar_select 0, %s6, %s4
  $region1: #{language_model_forward.5} parent=0
    #allocation2 [shape = 'u8[8192]{0}', space=vmem, size = 0x2000, scoped, tag = 'output window, operand 0, single buffered']
    #allocation3 [shape = 's32[1]{0}', space=sflag, size = 0x4, scoped, tag = 'scoped memory for language_model_forward.5']
    %8 = vsyncpa [#allocation3], 0
    // Predicated region
    $region2: #{language_model_forward.5} parent=1 // pred_check
      _
    $region3: #{language_model_forward.5} parent=1 // pred_check_branch
      %10 = sbr.rel (0) target = $region5
    $region4: #{language_model_forward.5} parent=1 // pred_region
      _
    $region5: #{language_model_forward.5} parent=1 // pred_fallthru
      _
    // Predicated region
    $region6: #{language_model_forward.5} parent=1 // pred_check
      _
    $region7: #{language_model_forward.5} parent=1 // pred_check_branch
      %12 = sbr.rel (0) target = $region9
    $region8: #{language_model_forward.5} parent=1 // pred_region
      _
    $region9: #{language_model_forward.5} parent=1 // pred_fallthru
      _
    // Predicated region
    $region10: #{language_model_forward.5} parent=1 // pred_check
      _
    $region11: #{language_model_forward.5} parent=1 // pred_check_branch
      %14 = sbr.rel (0) target = $region13
    $region12: #{language_model_forward.5} parent=1 // pred_region
      _
    $region13: #{language_model_forward.5} parent=1 // pred_fallthru
      _
    %v15 = vld [vmem:[%s0] sm:$0xff]
    %v16 = vld [vmem:[%s0 + $0x8] sm:$0xff]
    %v17 = vld [vmem:[%s1] sm:$0xff]
    %v18 = vld [vmem:[%s1 + $0x8] sm:$0xff]
    %v19 = vld [vmem:[%s1 + $0x10] sm:$0xff]
    %v20 = vld [vmem:[%s1 + $0x18] sm:$0xff]
    %v21 = vld [vmem:[%s2] sm:$0x1]
    %v23 = vlaneseq
    %v24 = vshrl.u32 %v23, 7
    %v25 = vsub.s32 0, %v24
    %v26 = vrot.slane %v21, %v25
    %vm28 = vcmask 261120
    %v30 = vsel %vm28, %v15, 0
    %v33 = vsel %vm28, %v16, 0
    %35 = vmatprep.subr.mxu0 0.0
    %36 = vmatpush1.msra.mxu0 %v17
    %37 = vmatprep.subr.mxu0 0.0
    %38 = vmatpush1.msra.mxu0 %v18
    %39 = vmatprep.subr.mxu0 0.0
    %40 = vmatpush1.msra.mxu0 %v19
    %41 = vmatprep.subr.mxu0 0.0
    %42 = vmatpush1.msra.mxu0 %v20
    %43 = vmatprep.subr.mxu0 0.0
    %44 = vmatpush1.msra.mxu0 0.0
    %45 = vmatprep.subr.mxu0 0.0
    %46 = vmatpush1.msra.mxu0 0.0
    %47 = vmatprep.subr.mxu0 0.0
    %48 = vmatpush1.msra.mxu0 0.0
    %49 = vmatprep.subr.mxu0 0.0
    %50 = vmatpush1.msra.mxu0 0.0
    %51 = vmatprep.subr.mxu0 0.0
    %52 = vmatpush1.msra.mxu0 0.0
    %53 = vmatprep.subr.mxu0 0.0
    %54 = vmatpush1.msra.mxu0 0.0
    %55 = vmatprep.subr.mxu0 0.0
    %56 = vmatpush1.msra.mxu0 0.0
    %57 = vmatprep.subr.mxu0 0.0
    %58 = vmatpush1.msra.mxu0 0.0
    %59 = vmatprep.subr.mxu0 0.0
    %60 = vmatpush1.msra.mxu0 0.0
    %61 = vmatprep.subr.mxu0 0.0
    %62 = vmatpush1.msra.mxu0 0.0
    %63 = vmatprep.subr.mxu0 0.0
    %64 = vmatpush1.msra.mxu0 0.0
    %65 = vmatprep.subr.mxu0 0.0
    %66 = vmatpush1.msra.mxu0 0.0
    %67 = vmatprep.subr.mxu0 0.0
    %68 = vmatpush1.msra.mxu0 0.0
    %69 = vmatprep.subr.mxu0 0.0
    %70 = vmatpush1.msra.mxu0 0.0
    %71 = vmatprep.subr.mxu0 0.0
    %72 = vmatpush1.msra.mxu0 0.0
    %73 = vmatprep.subr.mxu0 0.0
    %74 = vmatpush1.msra.mxu0 0.0
    %75 = vmatprep.subr.mxu0 0.0
    %76 = vmatpush1.msra.mxu0 0.0
    %77 = vmatprep.subr.mxu0 0.0
    %78 = vmatpush1.msra.mxu0 0.0
    %79 = vmatprep.subr.mxu0 0.0
    %80 = vmatpush1.msra.mxu0 0.0
    %81 = vmatprep.subr.mxu0 0.0
    %82 = vmatpush1.msra.mxu0 0.0
    %83 = vmatprep.subr.mxu0 0.0
    %84 = vmatpush1.msra.mxu0 0.0
    %85 = vmatprep.subr.mxu0 0.0
    %86 = vmatpush1.msra.mxu0 0.0
    %87 = vmatprep.subr.mxu0 0.0
    %88 = vmatpush1.msra.mxu0 0.0
    %89 = vmatprep.subr.mxu0 0.0
    %90 = vmatpush1.msra.mxu0 0.0
    %91 = vmatprep.subr.mxu0 0.0
    %92 = vmatpush1.msra.mxu0 0.0
    %93 = vmatprep.subr.mxu0 0.0
    %94 = vmatpush1.msra.mxu0 0.0
    %95 = vmatprep.subr.mxu0 0.0
    %96 = vmatpush1.msra.mxu0 0.0
    %97 = vmatprep.subr.mxu0 0.0
    %98 = vmatpush1.msra.mxu0 0.0
    %99 = vmatprep.mubr.f32.mxu0 0.0
    %100 = vmatmul.mubr.f32.gmra.mrb[0].mxu0 %v30
    %v101 = vpop.f32.mrb[0].mxu0
    %v102 = vadd.f32 %v26, %v101
    %v103 = vpop.f32.mrb[0].mxu0
    %104 = vmatprep.mubr.f32.mxu0 0.0
    %105 = vmatmul.mubr.f32.gmra.mrb[0].mxu0 %v33
    %v106 = vpop.f32.mrb[0].mxu0
    %v107 = vadd.f32 %v26, %v106
    %v108 = vpop.f32.mrb[0].mxu0
    %109 = vdwg.mxu0
    %vm110 = vcmask 130048
    %111 = vst.msk [vmem:[#allocation2] sm:$0xff] %vm110, %v102
    %112 = vst.msk [vmem:[#allocation2 + $0x8] sm:$0xff] %vm110, %v107
    // Predicated region
    $region14: #{language_model_forward.5} parent=1 // pred_check
      _
    $region15: #{language_model_forward.5} parent=1 // pred_check_branch
      %114 = sbr.rel (0) target = $region17
    $region16: #{language_model_forward.5} parent=1 // pred_region
      %s116 = ssub.s32 256, 256
      %117 = vsyncadd [#allocation3], %s116
      %s118 = sshll.u32 [#allocation2], 4
      %s119 = int_to_ptr.vmem [resolvable:$true] %s118
      %124 = dma.vmem_to_hbm [thread:$0]  %s119, 256, %s3, [#allocation3], 128, 128, 8
    $region17: #{language_model_forward.5} parent=1 // pred_fallthru
      _
    // Predicated region
    $region18: #{language_model_forward.5} parent=1 // pred_check
      _
    $region19: #{language_model_forward.5} parent=1 // pred_check_branch
      %126 = sbr.rel (0) target = $region21
    $region20: #{language_model_forward.5} parent=1 // pred_region
      %127 = dma.done [#allocation3], 256
    $region21: #{language_model_forward.5} parent=1 // pred_fallthru
      _
    %128 = vsyncpa [#allocation3], 1

// kernel: language_model_forward.3
$region0: #{language_model_forward.3}
  #allocation0 [shape = 'u32[]', space=smem, size = 0x4, offset = 0x4, fixed_abs, tag = 'smem constant byte address 0x4 - core index']
  #allocation1 [shape = 'u32[144,128]{1,0:T(1,128)}', space=vmem, size = 0x12000, scoped, tag = 'internal scratch']
  %s0 = inlined_call_operand.vmem [shape: f32[16,32], index: 0, kind: input, shape index: {}]
  %s1 = inlined_call_operand.vmem [shape: f32[32,96], index: 1, kind: input, shape index: {}]
  %s2 = inlined_call_operand.vmem [shape: f32[1,96], index: 2, kind: input, shape index: {}]
  %s3 = inlined_call_operand.vmem [shape: f32[16,96], index: 3, kind: output, shape index: {}]
  %s4 = sld [smem:[#allocation0]]
  $region22: #{language_model_forward.3} parent=0
    _
  %s6 = ssub.s32 1, %s4
  %s7 = scalar_select 0, %s6, %s4
  // Predicated region
  $region2: #{language_model_forward.3} parent=0 // pred_check
    _
  $region3: #{language_model_forward.3} parent=0 // pred_check_branch
    %9 = sbr.rel (0) target = $region5
  $region4: #{language_model_forward.3} parent=0 // pred_region
    _
  $region5: #{language_model_forward.3} parent=0 // pred_fallthru
    _
  // Predicated region
  $region6: #{language_model_forward.3} parent=0 // pred_check
    _
  $region7: #{language_model_forward.3} parent=0 // pred_check_branch
    %11 = sbr.rel (0) target = $region9
  $region8: #{language_model_forward.3} parent=0 // pred_region
    _
  $region9: #{language_model_forward.3} parent=0 // pred_fallthru
    _
  // Predicated region
  $region10: #{language_model_forward.3} parent=0 // pred_check
    _
  $region11: #{language_model_forward.3} parent=0 // pred_check_branch
    %13 = sbr.rel (0) target = $region13
  $region12: #{language_model_forward.3} parent=0 // pred_region
    _
  $region13: #{language_model_forward.3} parent=0 // pred_fallthru
    _
  %v14 = vld [vmem:[%s0] sm:$0xff]
  %v15 = vld [vmem:[%s0 + $0x8] sm:$0xff]
  %v16 = vld [vmem:[%s1] sm:$0xff]
  %v17 = vld [vmem:[%s1 + $0x8] sm:$0xff]
  %v18 = vld [vmem:[%s1 + $0x10] sm:$0xff]
  %v19 = vld [vmem:[%s1 + $0x18] sm:$0xff]
  %v20 = vld [vmem:[%s2] sm:$0x1]
  %v22 = vlaneseq
  %v23 = vshrl.u32 %v22, 7
  %v24 = vsub.s32 0, %v23
  %v25 = vrot.slane %v20, %v24
  %vm27 = vcmask 261120
  %v29 = vsel %vm27, %v14, 0
  %v32 = vsel %vm27, %v15, 0
  %34 = vmatprep.subr.mxu0 0.0
  %35 = vmatpush1.msra.mxu0 %v16
  %36 = vmatprep.subr.mxu0 0.0
  %37 = vmatpush1.msra.mxu0 %v17
  %38 = vmatprep.subr.mxu0 0.0
  %39 = vmatpush1.msra.mxu0 %v18
  %40 = vmatprep.subr.mxu0 0.0
  %41 = vmatpush1.msra.mxu0 %v19
  %42 = vmatprep.subr.mxu0 0.0
  %43 = vmatpush1.msra.mxu0 0.0
  %44 = vmatprep.subr.mxu0 0.0
  %45 = vmatpush1.msra.mxu0 0.0
  %46 = vmatprep.subr.mxu0 0.0
  %47 = vmatpush1.msra.mxu0 0.0
  %48 = vmatprep.subr.mxu0 0.0
  %49 = vmatpush1.msra.mxu0 0.0
  %50 = vmatprep.subr.mxu0 0.0
  %51 = vmatpush1.msra.mxu0 0.0
  %52 = vmatprep.subr.mxu0 0.0
  %53 = vmatpush1.msra.mxu0 0.0
  %54 = vmatprep.subr.mxu0 0.0
  %55 = vmatpush1.msra.mxu0 0.0
  %56 = vmatprep.subr.mxu0 0.0
  %57 = vmatpush1.msra.mxu0 0.0
  %58 = vmatprep.subr.mxu0 0.0
  %59 = vmatpush1.msra.mxu0 0.0
  %60 = vmatprep.subr.mxu0 0.0
  %61 = vmatpush1.msra.mxu0 0.0
  %62 = vmatprep.subr.mxu0 0.0
  %63 = vmatpush1.msra.mxu0 0.0
  %64 = vmatprep.subr.mxu0 0.0
  %65 = vmatpush1.msra.mxu0 0.0
  %66 = vmatprep.subr.mxu0 0.0
  %67 = vmatpush1.msra.mxu0 0.0
  %68 = vmatprep.subr.mxu0 0.0
  %69 = vmatpush1.msra.mxu0 0.0
  %70 = vmatprep.subr.mxu0 0.0
  %71 = vmatpush1.msra.mxu0 0.0
  %72 = vmatprep.subr.mxu0 0.0
  %73 = vmatpush1.msra.mxu0 0.0
  %74 = vmatprep.subr.mxu0 0.0
  %75 = vmatpush1.msra.mxu0 0.0
  %76 = vmatprep.subr.mxu0 0.0
  %77 = vmatpush1.msra.mxu0 0.0
  %78 = vmatprep.subr.mxu0 0.0
  %79 = vmatpush1.msra.mxu0 0.0
  %80 = vmatprep.subr.mxu0 0.0
  %81 = vmatpush1.msra.mxu0 0.0
  %82 = vmatprep.subr.mxu0 0.0
  %83 = vmatpush1.msra.mxu0 0.0
  %84 = vmatprep.subr.mxu0 0.0
  %85 = vmatpush1.msra.mxu0 0.0
  %86 = vmatprep.subr.mxu0 0.0
  %87 = vmatpush1.msra.mxu0 0.0
  %88 = vmatprep.subr.mxu0 0.0
  %89 = vmatpush1.msra.mxu0 0.0
  %90 = vmatprep.subr.mxu0 0.0
  %91 = vmatpush1.msra.mxu0 0.0
  %92 = vmatprep.subr.mxu0 0.0
  %93 = vmatpush1.msra.mxu0 0.0
  %94 = vmatprep.subr.mxu0 0.0
  %95 = vmatpush1.msra.mxu0 0.0
  %96 = vmatprep.subr.mxu0 0.0
  %97 = vmatpush1.msra.mxu0 0.0
  %98 = vmatprep.mubr.f32.mxu0 0.0
  %99 = vmatmul.mubr.f32.gmra.mrb[0].mxu0 %v29
  %v100 = vpop.f32.mrb[0].mxu0
  %v101 = vadd.f32 %v25, %v100
  %v102 = vpop.f32.mrb[0].mxu0
  %103 = vmatprep.mubr.f32.mxu0 0.0
  %104 = vmatmul.mubr.f32.gmra.mrb[0].mxu0 %v32
  %v105 = vpop.f32.mrb[0].mxu0
  %v106 = vadd.f32 %v25, %v105
  %v107 = vpop.f32.mrb[0].mxu0
  %108 = vdwg.mxu0
  %vm109 = vcmask 785408
  %110 = vst.msk [vmem:[%s3] sm:$0xff] %vm109, %v101
  %111 = vst.msk [vmem:[%s3 + $0x8] sm:$0xff] %vm109, %v106
  // Predicated region
  $region14: #{language_model_forward.3} parent=0 // pred_check
    _
  $region15: #{language_model_forward.3} parent=0 // pred_check_branch
    %113 = sbr.rel (0) target = $region17
  $region16: #{language_model_forward.3} parent=0 // pred_region
    _
  $region17: #{language_model_forward.3} parent=0 // pred_fallthru
    _
  // Predicated region
  $region18: #{language_model_forward.3} parent=0 // pred_check
    _
  $region19: #{language_model_forward.3} parent=0 // pred_check_branch
    %115 = sbr.rel (0) target = $region21
  $region20: #{language_model_forward.3} parent=0 // pred_region
    _
  $region21: #{language_model_forward.3} parent=0 // pred_fallthru
    _

// kernel: language_model_forward.4
$region0: #{language_model_forward.4}
  #allocation0 [shape = 'u32[]', space=smem, size = 0x4, offset = 0x4, fixed_abs, tag = 'smem constant byte address 0x4 - core index']
  #allocation1 [shape = 'u32[144,128]{1,0:T(1,128)}', space=vmem, size = 0x12000, scoped, tag = 'internal scratch']
  #allocation2 [shape = 'f32[2,32]{1,0:T(2,128)}', space=vmem, size = 0x400, scoped, tag = 'scratch operand']
  %s0 = inlined_call_operand.vmem [shape: f32[2,8,96], index: 0, kind: input, shape index: {}]
  %s1 = inlined_call_operand.vmem [shape: f32[32,96], index: 1, kind: input, shape index: {}]
  %s2 = inlined_call_operand.vmem [shape: f32[1,32], index: 2, kind: input, shape index: {}]
  %s3 = inlined_call_operand.vmem [shape: f32[2,8,32], index: 3, kind: output, shape index: {0}]
  %s4 = inlined_call_operand.hbm [shape: f32[2,32], index: 4, kind: output, shape index: {1}]
  %5 = xla_tuple %s3, %s4
  %s6 = sld [smem:[#allocation0]]
  $region38: #{language_model_forward.4} parent=0
    _
  %s8 = ssub.s32 1, %s6
  %s9 = scalar_select 0, %s8, %s6
  $region1: #{language_model_forward.4} parent=0
    #allocation3 [shape = 'u8[1024]{0}', space=vmem, size = 0x400, scoped, tag = 'output window, operand 1, single buffered']
    #allocation4 [shape = 's32[1]{0}', space=sflag, size = 0x4, scoped, tag = 'scoped memory for language_model_forward.4']
    %10 = vsyncpa [#allocation4], 0
    // Predicated region
    $region2: #{language_model_forward.4} parent=1 // pred_check
      _
    $region3: #{language_model_forward.4} parent=1 // pred_check_branch
      %12 = sbr.rel (0) target = $region5
    $region4: #{language_model_forward.4} parent=1 // pred_region
      _
    $region5: #{language_model_forward.4} parent=1 // pred_fallthru
      _
    // Predicated region
    $region6: #{language_model_forward.4} parent=1 // pred_check
      _
    $region7: #{language_model_forward.4} parent=1 // pred_check_branch
      %14 = sbr.rel (0) target = $region9
    $region8: #{language_model_forward.4} parent=1 // pred_region
      _
    $region9: #{language_model_forward.4} parent=1 // pred_fallthru
      _
    // Predicated region
    $region10: #{language_model_forward.4} parent=1 // pred_check
      _
    $region11: #{language_model_forward.4} parent=1 // pred_check_branch
      %16 = sbr.rel (0) target = $region13
    $region12: #{language_model_forward.4} parent=1 // pred_region
      _
    $region13: #{language_model_forward.4} parent=1 // pred_fallthru
      _
    %p17 = scmp.eq.s32.totalorder 0, 0
    // Predicated region
    $region14: #{language_model_forward.4} parent=1 // pred_check
      %p18 = pneg %p17
    $region15: #{language_model_forward.4} parent=1 // pred_check_branch
      %20 = sbr.rel (%p18) target = $region17
    $region16: #{language_model_forward.4} parent=1 // pred_region
      %vm21 = vcmask 254976
      %22 = vst.msk [vmem:[#allocation2] sm:$0x3] %vm21, 0.0
    $region17: #{language_model_forward.4} parent=1 // pred_fallthru
      _
    %v23 = vld [vmem:[#allocation2] sm:$0x3]
    %v24 = vld [vmem:[%s1] sm:$0xff]
    %v25 = vld [vmem:[%s1 + $0x8] sm:$0xff]
    %v26 = vld [vmem:[%s1 + $0x10] sm:$0xff]
    %v27 = vld [vmem:[%s1 + $0x18] sm:$0xff]
    %v28 = vld [vmem:[%s2] sm:$0x1]
    %v29 = vld [vmem:[%s0] sm:$0x1]
    %v30 = vld [vmem:[%s0 + $0x8] sm:$0x1]
    %vm31 = vcmask 261120
    %v33 = vsel %vm31, %v23, 0
    %35 = vmatprep.subr.mxu0 0.0
    %36 = vmatpush1.msra.mxu0 %v24
    %37 = vmatprep.subr.mxu0 0.0
    %38 = vmatpush1.msra.mxu0 %v25
    %39 = vmatprep.subr.mxu0 0.0
    %40 = vmatpush1.msra.mxu0 %v26
    %41 = vmatprep.subr.mxu0 0.0
    %42 = vmatpush1.msra.mxu0 %v27
    %43 = vmatprep.subr.mxu0 0.0
    %44 = vmatpush1.msra.mxu0 0.0
    %45 = vmatprep.subr.mxu0 0.0
    %46 = vmatpush1.msra.mxu0 0.0
    %47 = vmatprep.subr.mxu0 0.0
    %48 = vmatpush1.msra.mxu0 0.0
    %49 = vmatprep.subr.mxu0 0.0
    %50 = vmatpush1.msra.mxu0 0.0
    %51 = vmatprep.subr.mxu0 0.0
    %52 = vmatpush1.msra.mxu0 0.0
    %53 = vmatprep.subr.mxu0 0.0
    %54 = vmatpush1.msra.mxu0 0.0
    %55 = vmatprep.subr.mxu0 0.0
    %56 = vmatpush1.msra.mxu0 0.0
    %57 = vmatprep.subr.mxu0 0.0
    %58 = vmatpush1.msra.mxu0 0.0
    %59 = vmatprep.subr.mxu0 0.0
    %60 = vmatpush1.msra.mxu0 0.0
    %61 = vmatprep.subr.mxu0 0.0
    %62 = vmatpush1.msra.mxu0 0.0
    %63 = vmatprep.subr.mxu0 0.0
    %64 = vmatpush1.msra.mxu0 0.0
    %65 = vmatprep.subr.mxu0 0.0
    %66 = vmatpush1.msra.mxu0 0.0
    %67 = vmatprep.subr.mxu0 0.0
    %68 = vmatpush1.msra.mxu0 0.0
    %69 = vmatprep.subr.mxu0 0.0
    %70 = vmatpush1.msra.mxu0 0.0
    %71 = vmatprep.subr.mxu0 0.0
    %72 = vmatpush1.msra.mxu0 0.0
    %73 = vmatprep.subr.mxu0 0.0
    %74 = vmatpush1.msra.mxu0 0.0
    %75 = vmatprep.subr.mxu0 0.0
    %76 = vmatpush1.msra.mxu0 0.0
    %77 = vmatprep.subr.mxu0 0.0
    %78 = vmatpush1.msra.mxu0 0.0
    %79 = vmatprep.subr.mxu0 0.0
    %80 = vmatpush1.msra.mxu0 0.0
    %81 = vmatprep.subr.mxu0 0.0
    %82 = vmatpush1.msra.mxu0 0.0
    %83 = vmatprep.subr.mxu0 0.0
    %84 = vmatpush1.msra.mxu0 0.0
    %85 = vmatprep.subr.mxu0 0.0
    %86 = vmatpush1.msra.mxu0 0.0
    %87 = vmatprep.subr.mxu0 0.0
    %88 = vmatpush1.msra.mxu0 0.0
    %89 = vmatprep.subr.mxu0 0.0
    %90 = vmatpush1.msra.mxu0 0.0
    %91 = vmatprep.subr.mxu0 0.0
    %92 = vmatpush1.msra.mxu0 0.0
    %93 = vmatprep.subr.mxu0 0.0
    %94 = vmatpush1.msra.mxu0 0.0
    %95 = vmatprep.subr.mxu0 0.0
    %96 = vmatpush1.msra.mxu0 0.0
    %97 = vmatprep.subr.mxu0 0.0
    %98 = vmatpush1.msra.mxu0 0.0
    %99 = vmatprep.mubr.f32.mxu0 0.0
    %100 = vmatmul.mubr.f32.gmra.mrb[0].mxu0 %v33
    %v101 = vpop.f32.mrb[0].mxu0
    %v102 = vadd.f32 0.0, %v101
    %v103 = vpop.f32.mrb[0].mxu0
    %104 = vdwg.mxu0
    %v106 = vrot.slane %v102, 1
    %v109 = vadd.f32 %v29, %v102
    %v110 = vadd.f32 %v30, %v106
    %v111 = vxor.u32 %v109, 2147483648
    %v112 = vxor.u32 %v110, 2147483648
    %v113 = vmul.f32 %v111, 1.442695
    %v114 = vpow.pop %v113
    %v115 = vmul.f32 %v112, 1.442695
    %v116 = vpow.pop %v115
    %v117 = vadd.f32 %v114, 1.0
    %v118 = vadd.f32 %v116, 1.0
    %v119 = vrcp.pop %v117
    %v120 = vmul.f32 1.0, %v119
    %v121 = vrcp.pop %v118
    %v122 = vmul.f32 1.0, %v121
    %v124 = vlaneseq
    %v125 = vshrl.u32 %v124, 7
    %v126 = vsub.s32 0, %v125
    %v127 = vrot.slane %v28, %v126
    %128 = vrot.lane.b32.xlu0 %v127, 64
    %v129 = vpop.permute.xlu0 %128
    %v131 = vadd.f32 %v102, %v129
    %v133 = vrot.slane %v131, 1
    %134 = vrot.lane.b32.xlu0 %v131, 64
    %v135 = vpop.permute.xlu0 %134
    %136 = vrot.lane.b32.xlu0 %v133, 64
    %v137 = vpop.permute.xlu0 %136
    %v140 = vmul.f32 %v120, %v135
    %v141 = vmul.f32 %v122, %v137
    %144 = vrot.lane.b32.xlu0 %v140, 64
    %v145 = vpop.permute.xlu0 %144
    %146 = vrot.lane.b32.xlu0 %v141, 64
    %v147 = vpop.permute.xlu0 %146
    %v150 = vadd.f32 %v29, %v145
    %v151 = vadd.f32 %v30, %v147
    %v152 = vtanh.pop %v150
    %v153 = vtanh.pop %v151
    %v156 = vrot.slane %v153, 7
    %vm157 = vcmask 1041409
    %v158 = vsel %vm157, %v156, %v152
    %159 = vrot.lane.b32.xlu0 %v158, 64
    %v160 = vpop.permute.xlu0 %159
    %v162 = vsub.f32 %v23, %v160
    %v164 = vrot.slane %v162, 1
    %165 = vrot.lane.b32.xlu0 %v162, 32
    %v166 = vpop.permute.xlu0 %165
    %167 = vrot.lane.b32.xlu0 %v164, 32
    %v168 = vpop.permute.xlu0 %167
    %v171 = vmul.f32 %v120, %v166
    %v172 = vmul.f32 %v122, %v168
    %175 = vrot.lane.b32.xlu0 %v171, 32
    %v176 = vpop.permute.xlu0 %175
    %177 = vrot.lane.b32.xlu0 %v172, 32
    %v178 = vpop.permute.xlu0 %177
    %v181 = vadd.f32 %v152, %v176
    %v182 = vadd.f32 %v153, %v178
    %185 = vrot.lane.b32.xlu0 %v181, 64
    %v186 = vpop.permute.xlu0 %185
    %187 = vrot.lane.b32.xlu0 %v182, 64
    %v188 = vpop.permute.xlu0 %187
    %vm191 = vcmask 253952
    %192 = vst.msk [vmem:[%s3] sm:$0x1] %vm191, %v186
    %193 = vst.msk [vmem:[%s3 + $0x8] sm:$0x1] %vm191, %v188
    %v194 = vld [vmem:[%s0 + $0x1] sm:$0x1]
    %v195 = vld [vmem:[%s0 + $0x9] sm:$0x1]
    %v196 = vrot.slane %v182, 7
    %v197 = vsel %vm157, %v196, %v181
    %198 = vrot.lane.b32.xlu0 %v197, 64
    %v199 = vpop.permute.xlu0 %198
    %v200 = vsel %vm31, %v199, 0
    %202 = vmatprep.subr.mxu0 0.0
    %203 = vmatpush1.msra.mxu0 %v24
    %204 = vmatprep.subr.mxu0 0.0
    %205 = vmatpush1.msra.mxu0 %v25
    %206 = vmatprep.subr.mxu0 0.0
    %207 = vmatpush1.msra.mxu0 %v26
    %208 = vmatprep.subr.mxu0 0.0
    %209 = vmatpush1.msra.mxu0 %v27
    %210 = vmatprep.subr.mxu0 0.0
    %211 = vmatpush1.msra.mxu0 0.0
    %212 = vmatprep.subr.mxu0 0.0
    %213 = vmatpush1.msra.mxu0 0.0
    %214 = vmatprep.subr.mxu0 0.0
    %215 = vmatpush1.msra.mxu0 0.0
    %216 = vmatprep.subr.mxu0 0.0
    %217 = vmatpush1.msra.mxu0 0.0
    %218 = vmatprep.subr.mxu0 0.0
    %219 = vmatpush1.msra.mxu0 0.0
    %220 = vmatprep.subr.mxu0 0.0
    %221 = vmatpush1.msra.mxu0 0.0
    %222 = vmatprep.subr.mxu0 0.0
    %223 = vmatpush1.msra.mxu0 0.0
    %224 = vmatprep.subr.mxu0 0.0
    %225 = vmatpush1.msra.mxu0 0.0
    %226 = vmatprep.subr.mxu0 0.0
    %227 = vmatpush1.msra.mxu0 0.0
    %228 = vmatprep.subr.mxu0 0.0
    %229 = vmatpush1.msra.mxu0 0.0
    %230 = vmatprep.subr.mxu0 0.0
    %231 = vmatpush1.msra.mxu0 0.0
    %232 = vmatprep.subr.mxu0 0.0
    %233 = vmatpush1.msra.mxu0 0.0
    %234 = vmatprep.subr.mxu0 0.0
    %235 = vmatpush1.msra.mxu0 0.0
    %236 = vmatprep.subr.mxu0 0.0
    %237 = vmatpush1.msra.mxu0 0.0
    %238 = vmatprep.subr.mxu0 0.0
    %239 = vmatpush1.msra.mxu0 0.0
    %240 = vmatprep.subr.mxu0 0.0
    %241 = vmatpush1.msra.mxu0 0.0
    %242 = vmatprep.subr.mxu0 0.0
    %243 = vmatpush1.msra.mxu0 0.0
    %244 = vmatprep.subr.mxu0 0.0
    %245 = vmatpush1.msra.mxu0 0.0
    %246 = vmatprep.subr.mxu0 0.0
    %247 = vmatpush1.msra.mxu0 0.0
    %248 = vmatprep.subr.mxu0 0.0
    %249 = vmatpush1.msra.mxu0 0.0
    %250 = vmatprep.subr.mxu0 0.0
    %251 = vmatpush1.msra.mxu0 0.0
    %252 = vmatprep.subr.mxu0 0.0
    %253 = vmatpush1.msra.mxu0 0.0
    %254 = vmatprep.subr.mxu0 0.0
    %255 = vmatpush1.msra.mxu0 0.0
    %256 = vmatprep.subr.mxu0 0.0
    %257 = vmatpush1.msra.mxu0 0.0
    %258 = vmatprep.subr.mxu0 0.0
    %259 = vmatpush1.msra.mxu0 0.0
    %260 = vmatprep.subr.mxu0 0.0
    %261 = vmatpush1.msra.mxu0 0.0
    %262 = vmatprep.subr.mxu0 0.0
    %263 = vmatpush1.msra.mxu0 0.0
    %264 = vmatprep.subr.mxu0 0.0
    %265 = vmatpush1.msra.mxu0 0.0
    %266 = vmatprep.mubr.f32.mxu0 0.0
    %267 = vmatmul.mubr.f32.gmra.mrb[0].mxu0 %v200
    %v268 = vpop.f32.mrb[0].mxu0
    %v269 = vadd.f32 0.0, %v268
    %v270 = vpop.f32.mrb[0].mxu0
    %271 = vdwg.mxu0
    %v273 = vrot.slane %v269, 1
    %v276 = vadd.f32 %v194, %v269
    %v277 = vadd.f32 %v195, %v273
    %v278 = vxor.u32 %v276, 2147483648
    %v279 = vxor.u32 %v277, 2147483648
    %v280 = vmul.f32 %v278, 1.442695
    %v281 = vpow.pop %v280
    %v282 = vmul.f32 %v279, 1.442695
    %v283 = vpow.pop %v282
    %v284 = vadd.f32 %v281, 1.0
    %v285 = vadd.f32 %v283, 1.0
    %v286 = vrcp.pop %v284
    %v287 = vmul.f32 1.0, %v286
    %v288 = vrcp.pop %v285
    %v289 = vmul.f32 1.0, %v288
    %v290 = vadd.f32 %v269, %v129
    %v292 = vrot.slane %v290, 1
    %293 = vrot.lane.b32.xlu0 %v290, 64
    %v294 = vpop.permute.xlu0 %293
    %295 = vrot.lane.b32.xlu0 %v292, 64
    %v296 = vpop.permute.xlu0 %295
    %v299 = vmul.f32 %v287, %v294
    %v300 = vmul.f32 %v289, %v296
    %303 = vrot.lane.b32.xlu0 %v299, 64
    %v304 = vpop.permute.xlu0 %303
    %305 = vrot.lane.b32.xlu0 %v300, 64
    %v306 = vpop.permute.xlu0 %305
    %v309 = vadd.f32 %v194, %v304
    %v310 = vadd.f32 %v195, %v306
    %v311 = vtanh.pop %v309
    %v312 = vtanh.pop %v310
    %v313 = vsub.f32 %v181, %v311
    %v314 = vsub.f32 %v182, %v312
    %317 = vrot.lane.b32.xlu0 %v313, 96
    %v318 = vpop.permute.xlu0 %317
    %319 = vrot.lane.b32.xlu0 %v314, 96
    %v320 = vpop.permute.xlu0 %319
    %v323 = vmul.f32 %v287, %v318
    %v324 = vmul.f32 %v289, %v320
    %327 = vrot.lane.b32.xlu0 %v323, 32
    %v328 = vpop.permute.xlu0 %327
    %329 = vrot.lane.b32.xlu0 %v324, 32
    %v330 = vpop.permute.xlu0 %329
    %v333 = vadd.f32 %v311, %v328
    %v334 = vadd.f32 %v312, %v330
    %337 = vrot.lane.b32.xlu0 %v333, 64
    %v338 = vpop.permute.xlu0 %337
    %339 = vrot.lane.b32.xlu0 %v334, 64
    %v340 = vpop.permute.xlu0 %339
    %343 = vst.msk [vmem:[%s3 + $0x1] sm:$0x1] %vm191, %v338
    %344 = vst.msk [vmem:[%s3 + $0x9] sm:$0x1] %vm191, %v340
    %v345 = vld [vmem:[%s0 + $0x2] sm:$0x1]
    %v346 = vld [vmem:[%s0 + $0xa] sm:$0x1]
    %v347 = vrot.slane %v334, 7
    %v348 = vsel %vm157, %v347, %v333
    %349 = vrot.lane.b32.xlu0 %v348, 64
    %v350 = vpop.permute.xlu0 %349
    %v351 = vsel %vm31, %v350, 0
    %353 = vmatprep.subr.mxu0 0.0
    %354 = vmatpush1.msra.mxu0 %v24
    %355 = vmatprep.subr.mxu0 0.0
    %356 = vmatpush1.msra.mxu0 %v25
    %357 = vmatprep.subr.mxu0 0.0
    %358 = vmatpush1.msra.mxu0 %v26
    %359 = vmatprep.subr.mxu0 0.0
    %360 = vmatpush1.msra.mxu0 %v27
    %361 = vmatprep.subr.mxu0 0.0
    %362 = vmatpush1.msra.mxu0 0.0
    %363 = vmatprep.subr.mxu0 0.0
    %364 = vmatpush1.msra.mxu0 0.0
    %365 = vmatprep.subr.mxu0 0.0
    %366 = vmatpush1.msra.mxu0 0.0
    %367 = vmatprep.subr.mxu0 0.0
    %368 = vmatpush1.msra.mxu0 0.0
    %369 = vmatprep.subr.mxu0 0.0
    %370 = vmatpush1.msra.mxu0 0.0
    %371 = vmatprep.subr.mxu0 0.0
    %372 = vmatpush1.msra.mxu0 0.0
    %373 = vmatprep.subr.mxu0 0.0
    %374 = vmatpush1.msra.mxu0 0.0
    %375 = vmatprep.subr.mxu0 0.0
    %376 = vmatpush1.msra.mxu0 0.0
    %377 = vmatprep.subr.mxu0 0.0
    %378 = vmatpush1.msra.mxu0 0.0
    %379 = vmatprep.subr.mxu0 0.0
    %380 = vmatpush1.msra.mxu0 0.0
    %381 = vmatprep.subr.mxu0 0.0
    %382 = vmatpush1.msra.mxu0 0.0
    %383 = vmatprep.subr.mxu0 0.0
    %384 = vmatpush1.msra.mxu0 0.0
    %385 = vmatprep.subr.mxu0 0.0
    %386 = vmatpush1.msra.mxu0 0.0
    %387 = vmatprep.subr.mxu0 0.0
    %388 = vmatpush1.msra.mxu0 0.0
    %389 = vmatprep.subr.mxu0 0.0
    %390 = vmatpush1.msra.mxu0 0.0
    %391 = vmatprep.subr.mxu0 0.0
    %392 = vmatpush1.msra.mxu0 0.0
    %393 = vmatprep.subr.mxu0 0.0
    %394 = vmatpush1.msra.mxu0 0.0
    %395 = vmatprep.subr.mxu0 0.0
    %396 = vmatpush1.msra.mxu0 0.0
    %397 = vmatprep.subr.mxu0 0.0
    %398 = vmatpush1.msra.mxu0 0.0
    %399 = vmatprep.subr.mxu0 0.0
    %400 = vmatpush1.msra.mxu0 0.0
    %401 = vmatprep.subr.mxu0 0.0
    %402 = vmatpush1.msra.mxu0 0.0
    %403 = vmatprep.subr.mxu0 0.0
    %404 = vmatpush1.msra.mxu0 0.0
    %405 = vmatprep.subr.mxu0 0.0
    %406 = vmatpush1.msra.mxu0 0.0
    %407 = vmatprep.subr.mxu0 0.0
    %408 = vmatpush1.msra.mxu0 0.0
    %409 = vmatprep.subr.mxu0 0.0
    %410 = vmatpush1.msra.mxu0 0.0
    %411 = vmatprep.subr.mxu0 0.0
    %412 = vmatpush1.msra.mxu0 0.0
    %413 = vmatprep.subr.mxu0 0.0
    %414 = vmatpush1.msra.mxu0 0.0
    %415 = vmatprep.subr.mxu0 0.0
    %416 = vmatpush1.msra.mxu0 0.0
    %417 = vmatprep.mubr.f32.mxu0 0.0
    %418 = vmatmul.mubr.f32.gmra.mrb[0].mxu0 %v351
    %v419 = vpop.f32.mrb[0].mxu0
    %v420 = vadd.f32 0.0, %v419
    %v421 = vpop.f32.mrb[0].mxu0
    %422 = vdwg.mxu0
    %v424 = vrot.slane %v420, 1
    %v427 = vadd.f32 %v345, %v420
    %v428 = vadd.f32 %v346, %v424
    %v429 = vxor.u32 %v427, 2147483648
    %v430 = vxor.u32 %v428, 2147483648
    %v431 = vmul.f32 %v429, 1.442695
    %v432 = vpow.pop %v431
    %v433 = vmul.f32 %v430, 1.442695
    %v434 = vpow.pop %v433
    %v435 = vadd.f32 %v432, 1.0
    %v436 = vadd.f32 %v434, 1.0
    %v437 = vrcp.pop %v435
    %v438 = vmul.f32 1.0, %v437
    %v439 = vrcp.pop %v436
    %v440 = vmul.f32 1.0, %v439
    %v441 = vadd.f32 %v420, %v129
    %v443 = vrot.slane %v441, 1
    %444 = vrot.lane.b32.xlu0 %v441, 64
    %v445 = vpop.permute.xlu0 %444
    %446 = vrot.lane.b32.xlu0 %v443, 64
    %v447 = vpop.permute.xlu0 %446
    %v450 = vmul.f32 %v438, %v445
    %v451 = vmul.f32 %v440, %v447
    %454 = vrot.lane.b32.xlu0 %v450, 64
    %v455 = vpop.permute.xlu0 %454
    %456 = vrot.lane.b32.xlu0 %v451, 64
    %v457 = vpop.permute.xlu0 %456
    %v460 = vadd.f32 %v345, %v455
    %v461 = vadd.f32 %v346, %v457
    %v462 = vtanh.pop %v460
    %v463 = vtanh.pop %v461
    %v464 = vsub.f32 %v333, %v462
    %v465 = vsub.f32 %v334, %v463
    %468 = vrot.lane.b32.xlu0 %v464, 96
    %v469 = vpop.permute.xlu0 %468
    %470 = vrot.lane.b32.xlu0 %v465, 96
    %v471 = vpop.permute.xlu0 %470
    %v474 = vmul.f32 %v438, %v469
    %v475 = vmul.f32 %v440, %v471
    %478 = vrot.lane.b32.xlu0 %v474, 32
    %v479 = vpop.permute.xlu0 %478
    %480 = vrot.lane.b32.xlu0 %v475, 32
    %v481 = vpop.permute.xlu0 %480
    %v484 = vadd.f32 %v462, %v479
    %v485 = vadd.f32 %v463, %v481
    %488 = vrot.lane.b32.xlu0 %v484, 64
    %v489 = vpop.permute.xlu0 %488
    %490 = vrot.lane.b32.xlu0 %v485, 64
    %v491 = vpop.permute.xlu0 %490
    %494 = vst.msk [vmem:[%s3 + $0x2] sm:$0x1] %vm191, %v489
    %495 = vst.msk [vmem:[%s3 + $0xa] sm:$0x1] %vm191, %v491
    %v496 = vld [vmem:[%s0 + $0x3] sm:$0x1]
    %v497 = vld [vmem:[%s0 + $0xb] sm:$0x1]
    %v498 = vrot.slane %v485, 7
    %v499 = vsel %vm157, %v498, %v484
    %500 = vrot.lane.b32.xlu0 %v499, 64
    %v501 = vpop.permute.xlu0 %500
    %v502 = vsel %vm31, %v501, 0
    %504 = vmatprep.subr.mxu0 0.0
    %505 = vmatpush1.msra.mxu0 %v24
    %506 = vmatprep.subr.mxu0 0.0
    %507 = vmatpush1.msra.mxu0 %v25
    %508 = vmatprep.subr.mxu0 0.0
    %509 = vmatpush1.msra.mxu0 %v26
    %510 = vmatprep.subr.mxu0 0.0
    %511 = vmatpush1.msra.mxu0 %v27
    %512 = vmatprep.subr.mxu0 0.0
    %513 = vmatpush1.msra.mxu0 0.0
    %514 = vmatprep.subr.mxu0 0.0
    %515 = vmatpush1.msra.mxu0 0.0
    %516 = vmatprep.subr.mxu0 0.0
    %517 = vmatpush1.msra.mxu0 0.0
    %518 = vmatprep.subr.mxu0 0.0
    %519 = vmatpush1.msra.mxu0 0.0
    %520 = vmatprep.subr.mxu0 0.0
    %521 = vmatpush1.msra.mxu0 0.0
    %522 = vmatprep.subr.mxu0 0.0
    %523 = vmatpush1.msra.mxu0 0.0
    %524 = vmatprep.subr.mxu0 0.0
    %525 = vmatpush1.msra.mxu0 0.0
    %526 = vmatprep.subr.mxu0 0.0
    %527 = vmatpush1.msra.mxu0 0.0
    %528 = vmatprep.subr.mxu0 0.0
    %529 = vmatpush1.msra.mxu0 0.0
    %530 = vmatprep.subr.mxu0 0.0
    %531 = vmatpush1.msra.mxu0 0.0
    %532 = vmatprep.subr.mxu0 0.0
    %533 = vmatpush1.msra.mxu0 0.0
    %534 = vmatprep.subr.mxu0 0.0
    %535 = vmatpush1.msra.mxu0 0.0
    %536 = vmatprep.subr.mxu0 0.0
    %537 = vmatpush1.msra.mxu0 0.0
    %538 = vmatprep.subr.mxu0 0.0
    %539 = vmatpush1.msra.mxu0 0.0
    %540 = vmatprep.subr.mxu0 0.0
    %541 = vmatpush1.msra.mxu0 0.0
    %542 = vmatprep.subr.mxu0 0.0
    %543 = vmatpush1.msra.mxu0 0.0
    %544 = vmatprep.subr.mxu0 0.0
    %545 = vmatpush1.msra.mxu0 0.0
    %546 = vmatprep.subr.mxu0 0.0
    %547 = vmatpush1.msra.mxu0 0.0
    %548 = vmatprep.subr.mxu0 0.0
    %549 = vmatpush1.msra.mxu0 0.0
    %550 = vmatprep.subr.mxu0 0.0
    %551 = vmatpush1.msra.mxu0 0.0
    %552 = vmatprep.subr.mxu0 0.0
    %553 = vmatpush1.msra.mxu0 0.0
    %554 = vmatprep.subr.mxu0 0.0
    %555 = vmatpush1.msra.mxu0 0.0
    %556 = vmatprep.subr.mxu0 0.0
    %557 = vmatpush1.msra.mxu0 0.0
    %558 = vmatprep.subr.mxu0 0.0
    %559 = vmatpush1.msra.mxu0 0.0
    %560 = vmatprep.subr.mxu0 0.0
    %561 = vmatpush1.msra.mxu0 0.0
    %562 = vmatprep.subr.mxu0 0.0
    %563 = vmatpush1.msra.mxu0 0.0
    %564 = vmatprep.subr.mxu0 0.0
    %565 = vmatpush1.msra.mxu0 0.0
    %566 = vmatprep.subr.mxu0 0.0
    %567 = vmatpush1.msra.mxu0 0.0
    %568 = vmatprep.mubr.f32.mxu0 0.0
    %569 = vmatmul.mubr.f32.gmra.mrb[0].mxu0 %v502
    %v570 = vpop.f32.mrb[0].mxu0
    %v571 = vadd.f32 0.0, %v570
    %v572 = vpop.f32.mrb[0].mxu0
    %573 = vdwg.mxu0
    %v575 = vrot.slane %v571, 1
    %v578 = vadd.f32 %v496, %v571
    %v579 = vadd.f32 %v497, %v575
    %v580 = vxor.u32 %v578, 2147483648
    %v581 = vxor.u32 %v579, 2147483648
    %v582 = vmul.f32 %v580, 1.442695
    %v583 = vpow.pop %v582
    %v584 = vmul.f32 %v581, 1.442695
    %v585 = vpow.pop %v584
    %v586 = vadd.f32 %v583, 1.0
    %v587 = vadd.f32 %v585, 1.0
    %v588 = vrcp.pop %v586
    %v589 = vmul.f32 1.0, %v588
    %v590 = vrcp.pop %v587
    %v591 = vmul.f32 1.0, %v590
    %v592 = vadd.f32 %v571, %v129
    %v594 = vrot.slane %v592, 1
    %595 = vrot.lane.b32.xlu0 %v592, 64
    %v596 = vpop.permute.xlu0 %595
    %597 = vrot.lane.b32.xlu0 %v594, 64
    %v598 = vpop.permute.xlu0 %597
    %v601 = vmul.f32 %v589, %v596
    %v602 = vmul.f32 %v591, %v598
    %605 = vrot.lane.b32.xlu0 %v601, 64
    %v606 = vpop.permute.xlu0 %605
    %607 = vrot.lane.b32.xlu0 %v602, 64
    %v608 = vpop.permute.xlu0 %607
    %v611 = vadd.f32 %v496, %v606
    %v612 = vadd.f32 %v497, %v608
    %v613 = vtanh.pop %v611
    %v614 = vtanh.pop %v612
    %v615 = vsub.f32 %v484, %v613
    %v616 = vsub.f32 %v485, %v614
    %619 = vrot.lane.b32.xlu0 %v615, 96
    %v620 = vpop.permute.xlu0 %619
    %621 = vrot.lane.b32.xlu0 %v616, 96
    %v622 = vpop.permute.xlu0 %621
    %v625 = vmul.f32 %v589, %v620
    %v626 = vmul.f32 %v591, %v622
    %629 = vrot.lane.b32.xlu0 %v625, 32
    %v630 = vpop.permute.xlu0 %629
    %631 = vrot.lane.b32.xlu0 %v626, 32
    %v632 = vpop.permute.xlu0 %631
    %v635 = vadd.f32 %v613, %v630
    %v636 = vadd.f32 %v614, %v632
    %639 = vrot.lane.b32.xlu0 %v635, 64
    %v640 = vpop.permute.xlu0 %639
    %641 = vrot.lane.b32.xlu0 %v636, 64
    %v642 = vpop.permute.xlu0 %641
    %645 = vst.msk [vmem:[%s3 + $0x3] sm:$0x1] %vm191, %v640
    %646 = vst.msk [vmem:[%s3 + $0xb] sm:$0x1] %vm191, %v642
    %v647 = vld [vmem:[%s0 + $0x4] sm:$0x1]
    %v648 = vld [vmem:[%s0 + $0xc] sm:$0x1]
    %v649 = vrot.slane %v636, 7
    %v650 = vsel %vm157, %v649, %v635
    %651 = vrot.lane.b32.xlu0 %v650, 64
    %v652 = vpop.permute.xlu0 %651
    %v653 = vsel %vm31, %v652, 0
    %655 = vmatprep.subr.mxu0 0.0
    %656 = vmatpush1.msra.mxu0 %v24
    %657 = vmatprep.subr.mxu0 0.0
    %658 = vmatpush1.msra.mxu0 %v25
    %659 = vmatprep.subr.mxu0 0.0
    %660 = vmatpush1.msra.mxu0 %v26
    %661 = vmatprep.subr.mxu0 0.0
    %662 = vmatpush1.msra.mxu0 %v27
    %663 = vmatprep.subr.mxu0 0.0
    %664 = vmatpush1.msra.mxu0 0.0
    %665 = vmatprep.subr.mxu0 0.0
    %666 = vmatpush1.msra.mxu0 0.0
    %667 = vmatprep.subr.mxu0 0.0
    %668 = vmatpush1.msra.mxu0 0.0
    %669 = vmatprep.subr.mxu0 0.0
    %670 = vmatpush1.msra.mxu0 0.0
    %671 = vmatprep.subr.mxu0 0.0
    %672 = vmatpush1.msra.mxu0 0.0
    %673 = vmatprep.subr.mxu0 0.0
    %674 = vmatpush1.msra.mxu0 0.0
    %675 = vmatprep.subr.mxu0 0.0
    %676 = vmatpush1.msra.mxu0 0.0
    %677 = vmatprep.subr.mxu0 0.0
    %678 = vmatpush1.msra.mxu0 0.0
    %679 = vmatprep.subr.mxu0 0.0
    %680 = vmatpush1.msra.mxu0 0.0
    %681 = vmatprep.subr.mxu0 0.0
    %682 = vmatpush1.msra.mxu0 0.0
    %683 = vmatprep.subr.mxu0 0.0
    %684 = vmatpush1.msra.mxu0 0.0
    %685 = vmatprep.subr.mxu0 0.0
    %686 = vmatpush1.msra.mxu0 0.0
    %687 = vmatprep.subr.mxu0 0.0
    %688 = vmatpush1.msra.mxu0 0.0
    %689 = vmatprep.subr.mxu0 0.0
    %690 = vmatpush1.msra.mxu0 0.0
    %691 = vmatprep.subr.mxu0 0.0
    %692 = vmatpush1.msra.mxu0 0.0
    %693 = vmatprep.subr.mxu0 0.0
    %694 = vmatpush1.msra.mxu0 0.0
    %695 = vmatprep.subr.mxu0 0.0
    %696 = vmatpush1.msra.mxu0 0.0
    %697 = vmatprep.subr.mxu0 0.0
    %698 = vmatpush1.msra.mxu0 0.0
    %699 = vmatprep.subr.mxu0 0.0
    %700 = vmatpush1.msra.mxu0 0.0
    %701 = vmatprep.subr.mxu0 0.0
    %702 = vmatpush1.msra.mxu0 0.0
    %703 = vmatprep.subr.mxu0 0.0
    %704 = vmatpush1.msra.mxu0 0.0
    %705 = vmatprep.subr.mxu0 0.0
    %706 = vmatpush1.msra.mxu0 0.0
    %707 = vmatprep.subr.mxu0 0.0
    %708 = vmatpush1.msra.mxu0 0.0
    %709 = vmatprep.subr.mxu0 0.0
    %710 = vmatpush1.msra.mxu0 0.0
    %711 = vmatprep.subr.mxu0 0.0
    %712 = vmatpush1.msra.mxu0 0.0
    %713 = vmatprep.subr.mxu0 0.0
    %714 = vmatpush1.msra.mxu0 0.0
    %715 = vmatprep.subr.mxu0 0.0
    %716 = vmatpush1.msra.mxu0 0.0
    %717 = vmatprep.subr.mxu0 0.0
    %718 = vmatpush1.msra.mxu0 0.0
    %719 = vmatprep.mubr.f32.mxu0 0.0
    %720 = vmatmul.mubr.f32.gmra.mrb[0].mxu0 %v653
    %v721 = vpop.f32.mrb[0].mxu0
    %v722 = vadd.f32 0.0, %v721
    %v723 = vpop.f32.mrb[0].mxu0
    %724 = vdwg.mxu0
    %v726 = vrot.slane %v722, 1
    %v729 = vadd.f32 %v647, %v722
    %v730 = vadd.f32 %v648, %v726
    %v731 = vxor.u32 %v729, 2147483648
    %v732 = vxor.u32 %v730, 2147483648
    %v733 = vmul.f32 %v731, 1.442695
    %v734 = vpow.pop %v733
    %v735 = vmul.f32 %v732, 1.442695
    %v736 = vpow.pop %v735
    %v737 = vadd.f32 %v734, 1.0
    %v738 = vadd.f32 %v736, 1.0
    %v739 = vrcp.pop %v737
    %v740 = vmul.f32 1.0, %v739
    %v741 = vrcp.pop %v738
    %v742 = vmul.f32 1.0, %v741
    %v743 = vadd.f32 %v722, %v129
    %v745 = vrot.slane %v743, 1
    %746 = vrot.lane.b32.xlu0 %v743, 64
    %v747 = vpop.permute.xlu0 %746
    %748 = vrot.lane.b32.xlu0 %v745, 64
    %v749 = vpop.permute.xlu0 %748
    %v752 = vmul.f32 %v740, %v747
    %v753 = vmul.f32 %v742, %v749
    %756 = vrot.lane.b32.xlu0 %v752, 64
    %v757 = vpop.permute.xlu0 %756
    %758 = vrot.lane.b32.xlu0 %v753, 64
    %v759 = vpop.permute.xlu0 %758
    %v762 = vadd.f32 %v647, %v757
    %v763 = vadd.f32 %v648, %v759
    %v764 = vtanh.pop %v762
    %v765 = vtanh.pop %v763
    %v766 = vsub.f32 %v635, %v764
    %v767 = vsub.f32 %v636, %v765
    %770 = vrot.lane.b32.xlu0 %v766, 96
    %v771 = vpop.permute.xlu0 %770
    %772 = vrot.lane.b32.xlu0 %v767, 96
    %v773 = vpop.permute.xlu0 %772
    %v776 = vmul.f32 %v740, %v771
    %v777 = vmul.f32 %v742, %v773
    %780 = vrot.lane.b32.xlu0 %v776, 32
    %v781 = vpop.permute.xlu0 %780
    %782 = vrot.lane.b32.xlu0 %v777, 32
    %v783 = vpop.permute.xlu0 %782
    %v786 = vadd.f32 %v764, %v781
    %v787 = vadd.f32 %v765, %v783
    %790 = vrot.lane.b32.xlu0 %v786, 64
    %v791 = vpop.permute.xlu0 %790
    %792 = vrot.lane.b32.xlu0 %v787, 64
    %v793 = vpop.permute.xlu0 %792
    %796 = vst.msk [vmem:[%s3 + $0x4] sm:$0x1] %vm191, %v791
    %797 = vst.msk [vmem:[%s3 + $0xc] sm:$0x1] %vm191, %v793
    %v798 = vld [vmem:[%s0 + $0x5] sm:$0x1]
    %v799 = vld [vmem:[%s0 + $0xd] sm:$0x1]
    %v800 = vrot.slane %v787, 7
    %v801 = vsel %vm157, %v800, %v786
    %802 = vrot.lane.b32.xlu0 %v801, 64
    %v803 = vpop.permute.xlu0 %802
    %v804 = vsel %vm31, %v803, 0
    %806 = vmatprep.subr.mxu0 0.0
    %807 = vmatpush1.msra.mxu0 %v24
    %808 = vmatprep.subr.mxu0 0.0
    %809 = vmatpush1.msra.mxu0 %v25
    %810 = vmatprep.subr.mxu0 0.0
    %811 = vmatpush1.msra.mxu0 %v26
    %812 = vmatprep.subr.mxu0 0.0
    %813 = vmatpush1.msra.mxu0 %v27
    %814 = vmatprep.subr.mxu0 0.0
    %815 = vmatpush1.msra.mxu0 0.0
    %816 = vmatprep.subr.mxu0 0.0
    %817 = vmatpush1.msra.mxu0 0.0
    %818 = vmatprep.subr.mxu0 0.0
    %819 = vmatpush1.msra.mxu0 0.0
    %820 = vmatprep.subr.mxu0 0.0
    %821 = vmatpush1.msra.mxu0 0.0
    %822 = vmatprep.subr.mxu0 0.0
    %823 = vmatpush1.msra.mxu0 0.0
    %824 = vmatprep.subr.mxu0 0.0
    %825 = vmatpush1.msra.mxu0 0.0
    %826 = vmatprep.subr.mxu0 0.0
    %827 = vmatpush1.msra.mxu0 0.0
    %828 = vmatprep.subr.mxu0 0.0
    %829 = vmatpush1.msra.mxu0 0.0
    %830 = vmatprep.subr.mxu0 0.0
    %831 = vmatpush1.msra.mxu0 0.0
    %832 = vmatprep.subr.mxu0 0.0
    %833 = vmatpush1.msra.mxu0 0.0
    %834 = vmatprep.subr.mxu0 0.0
    %835 = vmatpush1.msra.mxu0 0.0
    %836 = vmatprep.subr.mxu0 0.0
    %837 = vmatpush1.msra.mxu0 0.0
    %838 = vmatprep.subr.mxu0 0.0
    %839 = vmatpush1.msra.mxu0 0.0
    %840 = vmatprep.subr.mxu0 0.0
    %841 = vmatpush1.msra.mxu0 0.0
    %842 = vmatprep.subr.mxu0 0.0
    %843 = vmatpush1.msra.mxu0 0.0
    %844 = vmatprep.subr.mxu0 0.0
    %845 = vmatpush1.msra.mxu0 0.0
    %846 = vmatprep.subr.mxu0 0.0
    %847 = vmatpush1.msra.mxu0 0.0
    %848 = vmatprep.subr.mxu0 0.0
    %849 = vmatpush1.msra.mxu0 0.0
    %850 = vmatprep.subr.mxu0 0.0
    %851 = vmatpush1.msra.mxu0 0.0
    %852 = vmatprep.subr.mxu0 0.0
    %853 = vmatpush1.msra.mxu0 0.0
    %854 = vmatprep.subr.mxu0 0.0
    %855 = vmatpush1.msra.mxu0 0.0
    %856 = vmatprep.subr.mxu0 0.0
    %857 = vmatpush1.msra.mxu0 0.0
    %858 = vmatprep.subr.mxu0 0.0
    %859 = vmatpush1.msra.mxu0 0.0
    %860 = vmatprep.subr.mxu0 0.0
    %861 = vmatpush1.msra.mxu0 0.0
    %862 = vmatprep.subr.mxu0 0.0
    %863 = vmatpush1.msra.mxu0 0.0
    %864 = vmatprep.subr.mxu0 0.0
    %865 = vmatpush1.msra.mxu0 0.0
    %866 = vmatprep.subr.mxu0 0.0
    %867 = vmatpush1.msra.mxu0 0.0
    %868 = vmatprep.subr.mxu0 0.0
    %869 = vmatpush1.msra.mxu0 0.0
    %870 = vmatprep.mubr.f32.mxu0 0.0
    %871 = vmatmul.mubr.f32.gmra.mrb[0].mxu0 %v804
    %v872 = vpop.f32.mrb[0].mxu0
    %v873 = vadd.f32 0.0, %v872
    %v874 = vpop.f32.mrb[0].mxu0
    %875 = vdwg.mxu0
    %v877 = vrot.slane %v873, 1
    %v880 = vadd.f32 %v798, %v873
    %v881 = vadd.f32 %v799, %v877
    %v882 = vxor.u32 %v880, 2147483648
    %v883 = vxor.u32 %v881, 2147483648
    %v884 = vmul.f32 %v882, 1.442695
    %v885 = vpow.pop %v884
    %v886 = vmul.f32 %v883, 1.442695
    %v887 = vpow.pop %v886
    %v888 = vadd.f32 %v885, 1.0
    %v889 = vadd.f32 %v887, 1.0
    %v890 = vrcp.pop %v888
    %v891 = vmul.f32 1.0, %v890
    %v892 = vrcp.pop %v889
    %v893 = vmul.f32 1.0, %v892
    %v894 = vadd.f32 %v873, %v129
    %v896 = vrot.slane %v894, 1
    %897 = vrot.lane.b32.xlu0 %v894, 64
    %v898 = vpop.permute.xlu0 %897
    %899 = vrot.lane.b32.xlu0 %v896, 64
    %v900 = vpop.permute.xlu0 %899
    %v903 = vmul.f32 %v891, %v898
    %v904 = vmul.f32 %v893, %v900
    %907 = vrot.lane.b32.xlu0 %v903, 64
    %v908 = vpop.permute.xlu0 %907
    %909 = vrot.lane.b32.xlu0 %v904, 64
    %v910 = vpop.permute.xlu0 %909
    %v913 = vadd.f32 %v798, %v908
    %v914 = vadd.f32 %v799, %v910
    %v915 = vtanh.pop %v913
    %v916 = vtanh.pop %v914
    %v917 = vsub.f32 %v786, %v915
    %v918 = vsub.f32 %v787, %v916
    %921 = vrot.lane.b32.xlu0 %v917, 96
    %v922 = vpop.permute.xlu0 %921
    %923 = vrot.lane.b32.xlu0 %v918, 96
    %v924 = vpop.permute.xlu0 %923
    %v927 = vmul.f32 %v891, %v922
    %v928 = vmul.f32 %v893, %v924
    %931 = vrot.lane.b32.xlu0 %v927, 32
    %v932 = vpop.permute.xlu0 %931
    %933 = vrot.lane.b32.xlu0 %v928, 32
    %v934 = vpop.permute.xlu0 %933
    %v937 = vadd.f32 %v915, %v932
    %v938 = vadd.f32 %v916, %v934
    %941 = vrot.lane.b32.xlu0 %v937, 64
    %v942 = vpop.permute.xlu0 %941
    %943 = vrot.lane.b32.xlu0 %v938, 64
    %v944 = vpop.permute.xlu0 %943
    %947 = vst.msk [vmem:[%s3 + $0x5] sm:$0x1] %vm191, %v942
    %948 = vst.msk [vmem:[%s3 + $0xd] sm:$0x1] %vm191, %v944
    %v949 = vld [vmem:[%s0 + $0x6] sm:$0x1]
    %v950 = vld [vmem:[%s0 + $0xe] sm:$0x1]
    %v951 = vrot.slane %v938, 7
    %v952 = vsel %vm157, %v951, %v937
    %953 = vrot.lane.b32.xlu0 %v952, 64
    %v954 = vpop.permute.xlu0 %953
    %v955 = vsel %vm31, %v954, 0
    %957 = vmatprep.subr.mxu0 0.0
    %958 = vmatpush1.msra.mxu0 %v24
    %959 = vmatprep.subr.mxu0 0.0
    %960 = vmatpush1.msra.mxu0 %v25
    %961 = vmatprep.subr.mxu0 0.0
    %962 = vmatpush1.msra.mxu0 %v26
    %963 = vmatprep.subr.mxu0 0.0
    %964 = vmatpush1.msra.mxu0 %v27
    %965 = vmatprep.subr.mxu0 0.0
    %966 = vmatpush1.msra.mxu0 0.0
    %967 = vmatprep.subr.mxu0 0.0
    %968 = vmatpush1.msra.mxu0 0.0
    %969 = vmatprep.subr.mxu0 0.0
    %970 = vmatpush1.msra.mxu0 0.0
    %971 = vmatprep.subr.mxu0 0.0
    %972 = vmatpush1.msra.mxu0 0.0
    %973 = vmatprep.subr.mxu0 0.0
    %974 = vmatpush1.msra.mxu0 0.0
    %975 = vmatprep.subr.mxu0 0.0
    %976 = vmatpush1.msra.mxu0 0.0
    %977 = vmatprep.subr.mxu0 0.0
    %978 = vmatpush1.msra.mxu0 0.0
    %979 = vmatprep.subr.mxu0 0.0
    %980 = vmatpush1.msra.mxu0 0.0
    %981 = vmatprep.subr.mxu0 0.0
    %982 = vmatpush1.msra.mxu0 0.0
    %983 = vmatprep.subr.mxu0 0.0
    %984 = vmatpush1.msra.mxu0 0.0
    %985 = vmatprep.subr.mxu0 0.0
    %986 = vmatpush1.msra.mxu0 0.0
    %987 = vmatprep.subr.mxu0 0.0
    %988 = vmatpush1.msra.mxu0 0.0
    %989 = vmatprep.subr.mxu0 0.0
    %990 = vmatpush1.msra.mxu0 0.0
    %991 = vmatprep.subr.mxu0 0.0
    %992 = vmatpush1.msra.mxu0 0.0
    %993 = vmatprep.subr.mxu0 0.0
    %994 = vmatpush1.msra.mxu0 0.0
    %995 = vmatprep.subr.mxu0 0.0
    %996 = vmatpush1.msra.mxu0 0.0
    %997 = vmatprep.subr.mxu0 0.0
    %998 = vmatpush1.msra.mxu0 0.0
    %999 = vmatprep.subr.mxu0 0.0
    %1000 = vmatpush1.msra.mxu0 0.0
    %1001 = vmatprep.subr.mxu0 0.0
    %1002 = vmatpush1.msra.mxu0 0.0
    %1003 = vmatprep.subr.mxu0 0.0
    %1004 = vmatpush1.msra.mxu0 0.0
    %1005 = vmatprep.subr.mxu0 0.0
    %1006 = vmatpush1.msra.mxu0 0.0
    %1007 = vmatprep.subr.mxu0 0.0
    %1008 = vmatpush1.msra.mxu0 0.0
    %1009 = vmatprep.subr.mxu0 0.0
    %1010 = vmatpush1.msra.mxu0 0.0
    %1011 = vmatprep.subr.mxu0 0.0
    %1012 = vmatpush1.msra.mxu0 0.0
    %1013 = vmatprep.subr.mxu0 0.0
    %1014 = vmatpush1.msra.mxu0 0.0
    %1015 = vmatprep.subr.mxu0 0.0
    %1016 = vmatpush1.msra.mxu0 0.0
    %1017 = vmatprep.subr.mxu0 0.0
    %1018 = vmatpush1.msra.mxu0 0.0
    %1019 = vmatprep.subr.mxu0 0.0
    %1020 = vmatpush1.msra.mxu0 0.0
    %1021 = vmatprep.mubr.f32.mxu0 0.0
    %1022 = vmatmul.mubr.f32.gmra.mrb[0].mxu0 %v955
    %v1023 = vpop.f32.mrb[0].mxu0
    %v1024 = vadd.f32 0.0, %v1023
    %v1025 = vpop.f32.mrb[0].mxu0
    %1026 = vdwg.mxu0
    %v1028 = vrot.slane %v1024, 1
    %v1031 = vadd.f32 %v949, %v1024
    %v1032 = vadd.f32 %v950, %v1028
    %v1033 = vxor.u32 %v1031, 2147483648
    %v1034 = vxor.u32 %v1032, 2147483648
    %v1035 = vmul.f32 %v1033, 1.442695
    %v1036 = vpow.pop %v1035
    %v1037 = vmul.f32 %v1034, 1.442695
    %v1038 = vpow.pop %v1037
    %v1039 = vadd.f32 %v1036, 1.0
    %v1040 = vadd.f32 %v1038, 1.0
    %v1041 = vrcp.pop %v1039
    %v1042 = vmul.f32 1.0, %v1041
    %v1043 = vrcp.pop %v1040
    %v1044 = vmul.f32 1.0, %v1043
    %v1045 = vadd.f32 %v1024, %v129
    %v1047 = vrot.slane %v1045, 1
    %1048 = vrot.lane.b32.xlu0 %v1045, 64
    %v1049 = vpop.permute.xlu0 %1048
    %1050 = vrot.lane.b32.xlu0 %v1047, 64
    %v1051 = vpop.permute.xlu0 %1050
    %v1054 = vmul.f32 %v1042, %v1049
    %v1055 = vmul.f32 %v1044, %v1051
    %1058 = vrot.lane.b32.xlu0 %v1054, 64
    %v1059 = vpop.permute.xlu0 %1058
    %1060 = vrot.lane.b32.xlu0 %v1055, 64
    %v1061 = vpop.permute.xlu0 %1060
    %v1064 = vadd.f32 %v949, %v1059
    %v1065 = vadd.f32 %v950, %v1061
    %v1066 = vtanh.pop %v1064
    %v1067 = vtanh.pop %v1065
    %v1068 = vsub.f32 %v937, %v1066
    %v1069 = vsub.f32 %v938, %v1067
    %1072 = vrot.lane.b32.xlu0 %v1068, 96
    %v1073 = vpop.permute.xlu0 %1072
    %1074 = vrot.lane.b32.xlu0 %v1069, 96
    %v1075 = vpop.permute.xlu0 %1074
    %v1078 = vmul.f32 %v1042, %v1073
    %v1079 = vmul.f32 %v1044, %v1075
    %1082 = vrot.lane.b32.xlu0 %v1078, 32
    %v1083 = vpop.permute.xlu0 %1082
    %1084 = vrot.lane.b32.xlu0 %v1079, 32
    %v1085 = vpop.permute.xlu0 %1084
    %v1088 = vadd.f32 %v1066, %v1083
    %v1089 = vadd.f32 %v1067, %v1085
    %1092 = vrot.lane.b32.xlu0 %v1088, 64
    %v1093 = vpop.permute.xlu0 %1092
    %1094 = vrot.lane.b32.xlu0 %v1089, 64
    %v1095 = vpop.permute.xlu0 %1094
    %1098 = vst.msk [vmem:[%s3 + $0x6] sm:$0x1] %vm191, %v1093
    %1099 = vst.msk [vmem:[%s3 + $0xe] sm:$0x1] %vm191, %v1095
    %v1100 = vld [vmem:[%s0 + $0x7] sm:$0x1]
    %v1101 = vld [vmem:[%s0 + $0xf] sm:$0x1]
    %v1102 = vrot.slane %v1089, 7
    %v1103 = vsel %vm157, %v1102, %v1088
    %1104 = vrot.lane.b32.xlu0 %v1103, 64
    %v1105 = vpop.permute.xlu0 %1104
    %v1106 = vsel %vm31, %v1105, 0
    %1108 = vmatprep.subr.mxu0 0.0
    %1109 = vmatpush1.msra.mxu0 %v24
    %1110 = vmatprep.subr.mxu0 0.0
    %1111 = vmatpush1.msra.mxu0 %v25
    %1112 = vmatprep.subr.mxu0 0.0
    %1113 = vmatpush1.msra.mxu0 %v26
    %1114 = vmatprep.subr.mxu0 0.0
    %1115 = vmatpush1.msra.mxu0 %v27
    %1116 = vmatprep.subr.mxu0 0.0
    %1117 = vmatpush1.msra.mxu0 0.0
    %1118 = vmatprep.subr.mxu0 0.0
    %1119 = vmatpush1.msra.mxu0 0.0
    %1120 = vmatprep.subr.mxu0 0.0
    %1121 = vmatpush1.msra.mxu0 0.0
    %1122 = vmatprep.subr.mxu0 0.0
    %1123 = vmatpush1.msra.mxu0 0.0
    %1124 = vmatprep.subr.mxu0 0.0
    %1125 = vmatpush1.msra.mxu0 0.0
    %1126 = vmatprep.subr.mxu0 0.0
    %1127 = vmatpush1.msra.mxu0 0.0
    %1128 = vmatprep.subr.mxu0 0.0
    %1129 = vmatpush1.msra.mxu0 0.0
    %1130 = vmatprep.subr.mxu0 0.0
    %1131 = vmatpush1.msra.mxu0 0.0
    %1132 = vmatprep.subr.mxu0 0.0
    %1133 = vmatpush1.msra.mxu0 0.0
    %1134 = vmatprep.subr.mxu0 0.0
    %1135 = vmatpush1.msra.mxu0 0.0
    %1136 = vmatprep.subr.mxu0 0.0
    %1137 = vmatpush1.msra.mxu0 0.0
    %1138 = vmatprep.subr.mxu0 0.0
    %1139 = vmatpush1.msra.mxu0 0.0
    %1140 = vmatprep.subr.mxu0 0.0
    %1141 = vmatpush1.msra.mxu0 0.0
    %1142 = vmatprep.subr.mxu0 0.0
    %1143 = vmatpush1.msra.mxu0 0.0
    %1144 = vmatprep.subr.mxu0 0.0
    %1145 = vmatpush1.msra.mxu0 0.0
    %1146 = vmatprep.subr.mxu0 0.0
    %1147 = vmatpush1.msra.mxu0 0.0
    %1148 = vmatprep.subr.mxu0 0.0
    %1149 = vmatpush1.msra.mxu0 0.0
    %1150 = vmatprep.subr.mxu0 0.0
    %1151 = vmatpush1.msra.mxu0 0.0
    %1152 = vmatprep.subr.mxu0 0.0
    %1153 = vmatpush1.msra.mxu0 0.0
    %1154 = vmatprep.subr.mxu0 0.0
    %1155 = vmatpush1.msra.mxu0 0.0
    %1156 = vmatprep.subr.mxu0 0.0
    %1157 = vmatpush1.msra.mxu0 0.0
    %1158 = vmatprep.subr.mxu0 0.0
    %1159 = vmatpush1.msra.mxu0 0.0
    %1160 = vmatprep.subr.mxu0 0.0
    %1161 = vmatpush1.msra.mxu0 0.0
    %1162 = vmatprep.subr.mxu0 0.0
    %1163 = vmatpush1.msra.mxu0 0.0
    %1164 = vmatprep.subr.mxu0 0.0
    %1165 = vmatpush1.msra.mxu0 0.0
    %1166 = vmatprep.subr.mxu0 0.0
    %1167 = vmatpush1.msra.mxu0 0.0
    %1168 = vmatprep.subr.mxu0 0.0
    %1169 = vmatpush1.msra.mxu0 0.0
    %1170 = vmatprep.subr.mxu0 0.0
    %1171 = vmatpush1.msra.mxu0 0.0
    %1172 = vmatprep.mubr.f32.mxu0 0.0
    %1173 = vmatmul.mubr.f32.gmra.mrb[0].mxu0 %v1106
    %v1174 = vpop.f32.mrb[0].mxu0
    %v1175 = vadd.f32 0.0, %v1174
    %v1176 = vpop.f32.mrb[0].mxu0
    %1177 = vdwg.mxu0
    %v1179 = vrot.slane %v1175, 1
    %v1182 = vadd.f32 %v1100, %v1175
    %v1183 = vadd.f32 %v1101, %v1179
    %v1184 = vxor.u32 %v1182, 2147483648
    %v1185 = vxor.u32 %v1183, 2147483648
    %v1186 = vmul.f32 %v1184, 1.442695
    %v1187 = vpow.pop %v1186
    %v1188 = vmul.f32 %v1185, 1.442695
    %v1189 = vpow.pop %v1188
    %v1190 = vadd.f32 %v1187, 1.0
    %v1191 = vadd.f32 %v1189, 1.0
    %v1192 = vrcp.pop %v1190
    %v1193 = vmul.f32 1.0, %v1192
    %v1194 = vrcp.pop %v1191
    %v1195 = vmul.f32 1.0, %v1194
    %v1196 = vadd.f32 %v1175, %v129
    %v1198 = vrot.slane %v1196, 1
    %1199 = vrot.lane.b32.xlu0 %v1196, 64
    %v1200 = vpop.permute.xlu0 %1199
    %1201 = vrot.lane.b32.xlu0 %v1198, 64
    %v1202 = vpop.permute.xlu0 %1201
    %v1205 = vmul.f32 %v1193, %v1200
    %v1206 = vmul.f32 %v1195, %v1202
    %1209 = vrot.lane.b32.xlu0 %v1205, 64
    %v1210 = vpop.permute.xlu0 %1209
    %1211 = vrot.lane.b32.xlu0 %v1206, 64
    %v1212 = vpop.permute.xlu0 %1211
    %v1215 = vadd.f32 %v1100, %v1210
    %v1216 = vadd.f32 %v1101, %v1212
    %v1217 = vtanh.pop %v1215
    %v1218 = vtanh.pop %v1216
    %v1219 = vsub.f32 %v1088, %v1217
    %v1220 = vsub.f32 %v1089, %v1218
    %1223 = vrot.lane.b32.xlu0 %v1219, 96
    %v1224 = vpop.permute.xlu0 %1223
    %1225 = vrot.lane.b32.xlu0 %v1220, 96
    %v1226 = vpop.permute.xlu0 %1225
    %v1229 = vmul.f32 %v1193, %v1224
    %v1230 = vmul.f32 %v1195, %v1226
    %1233 = vrot.lane.b32.xlu0 %v1229, 32
    %v1234 = vpop.permute.xlu0 %1233
    %1235 = vrot.lane.b32.xlu0 %v1230, 32
    %v1236 = vpop.permute.xlu0 %1235
    %v1239 = vadd.f32 %v1217, %v1234
    %v1240 = vadd.f32 %v1218, %v1236
    %1243 = vrot.lane.b32.xlu0 %v1239, 64
    %v1244 = vpop.permute.xlu0 %1243
    %1245 = vrot.lane.b32.xlu0 %v1240, 64
    %v1246 = vpop.permute.xlu0 %1245
    %1249 = vst.msk [vmem:[%s3 + $0x7] sm:$0x1] %vm191, %v1244
    %1250 = vst.msk [vmem:[%s3 + $0xf] sm:$0x1] %vm191, %v1246
    %v1251 = vrot.slane %v1240, 7
    %v1252 = vsel %vm157, %v1251, %v1239
    %1253 = vrot.lane.b32.xlu0 %v1252, 64
    %v1254 = vpop.permute.xlu0 %1253
    %vm1256 = vcmask 254976
    %1257 = vst.msk [vmem:[#allocation2] sm:$0x3] %vm1256, %v1254
    // Predicated region
    $region18: #{language_model_forward.4} parent=1 // pred_check
      %p1258 = pneg %p17
    $region19: #{language_model_forward.4} parent=1 // pred_check_branch
      %1260 = sbr.rel (%p1258) target = $region21
    $region20: #{language_model_forward.4} parent=1 // pred_region
      %1261 = vst.msk [vmem:[#allocation3] sm:$0x3] %vm1256, %v1254
    $region21: #{language_model_forward.4} parent=1 // pred_fallthru
      _
    // Predicated region
    $region22: #{language_model_forward.4} parent=1 // pred_check
      _
    $region23: #{language_model_forward.4} parent=1 // pred_check_branch
      %1263 = sbr.rel (0) target = $region25
    $region24: #{language_model_forward.4} parent=1 // pred_region
      _
    $region25: #{language_model_forward.4} parent=1 // pred_fallthru
      _
    // Predicated region
    $region26: #{language_model_forward.4} parent=1 // pred_check
      _
    $region27: #{language_model_forward.4} parent=1 // pred_check_branch
      %1265 = sbr.rel (0) target = $region29
    $region28: #{language_model_forward.4} parent=1 // pred_region
      %s1267 = ssub.s32 32, 32
      %1268 = vsyncadd [#allocation4], %s1267
      %s1270 = sshll.u32 [#allocation3], 4
      %s1271 = int_to_ptr.vmem [resolvable:$true] %s1270
      %1273 = dma.vmem_to_hbm [thread:$0]  %s1271, 32, %s4, [#allocation4]
    $region29: #{language_model_forward.4} parent=1 // pred_fallthru
      _
    // Predicated region
    $region30: #{language_model_forward.4} parent=1 // pred_check
      _
    $region31: #{language_model_forward.4} parent=1 // pred_check_branch
      %1275 = sbr.rel (0) target = $region33
    $region32: #{language_model_forward.4} parent=1 // pred_region
      _
    $region33: #{language_model_forward.4} parent=1 // pred_fallthru
      _
    // Predicated region
    $region34: #{language_model_forward.4} parent=1 // pred_check
      _
    $region35: #{language_model_forward.4} parent=1 // pred_check_branch
      %1277 = sbr.rel (0) target = $region37
    $region36: #{language_model_forward.4} parent=1 // pred_region
      %1278 = dma.done [#allocation4], 32
    $region37: #{language_model_forward.4} parent=1 // pred_fallthru
      _
    %1279 = vsyncpa [#allocation4], 1

</llo_original>
